<compile_context>
chip_gen: v6e
topology: v6e:2x2x1
jax: 0.10.0
libtpu: 0.0.40
codegen_flags: <defaults>
</compile_context>

<pallas_src>
import functools

import jax
import jax.numpy as jnp
from jax.experimental import pallas as pl
from jax.experimental.pallas import tpu as pltpu


# ---------------------------------------------------------------------------
# Fused scoring kernel:
#   fc1 -> ReLU -> fc2 -> ReLU -> fc3 (VPU/XLU row-dot) -> sigmoid
#   plus the per-row L2 feature magnitude, written into ONE lane-dense
#   (tm, 128) bf16 slab: lane 0 = score, lane 1 = ||x||_2, other lanes zero.
# ---------------------------------------------------------------------------
def _mlp_score_kernel(x_ref, w1_ref, w2_ref, small_ref, b3_ref, out_ref):
    xb = x_ref[...]                                            # (tm, F) bf16
    b1 = small_ref[:, 0:512]                                   # (1, 512) f32
    b2 = small_ref[:, 512:640]                                 # (1, 128) f32
    w3 = small_ref[:, 640:768]                                 # (1, 128) f32 fc3 weight row
    b3 = b3_ref[0]                                             # f32 scalar (SMEM)

    h1 = jnp.dot(xb, w1_ref[...], preferred_element_type=jnp.float32) + b1
    h1 = jnp.maximum(h1, 0.0)                                  # ReLU(fc1)
    h2 = jnp.dot(h1.astype(jnp.bfloat16), w2_ref[...],
                 preferred_element_type=jnp.float32) + b2
    h2 = jnp.maximum(h2, 0.0)                                  # ReLU(fc2)

    # fc3 has a single output column: VPU multiply + cross-lane (XLU) reduce
    # instead of a zero-padded 128x128 MXU matmul.
    logits = jnp.sum(h2 * w3, axis=-1, keepdims=True) + b3     # (tm, 1)
    s = jax.nn.sigmoid(logits)                                 # (tm, 1) f32

    # torch.norm(features, p=2, dim=2): f32 sum-of-squares of the bf16 rows.
    xf = xb.astype(jnp.float32)
    mag = jnp.sqrt(jnp.sum(xf * xf, axis=-1, keepdims=True))   # (tm, 1) f32

    lane = jax.lax.broadcasted_iota(jnp.int32, out_ref.shape, 1)
    out_ref[...] = jnp.where(lane == 0, s,
                             jnp.where(lane == 1, mag, 0.0)).astype(out_ref.dtype)


def mlp_scores_and_magnitudes(x2d, params, max_tm=512):
    """x2d: (M, F) float32/bfloat16. Returns (scores (M,), magnitudes (M,)) f32."""
    M, F = x2d.shape
    w1, w2, small, b3 = params
    H1 = w1.shape[1]        # 512
    H2 = w2.shape[1]        # 128
    OUT = 128               # lane-dense packed output width

    # >= 2 grid steps (v7x megacore + DMA/compute overlap); padding <= 7 rows,
    # handled by Pallas block masking (no materialized pad of the activations).
    n_steps = max(2, pl.cdiv(M, max_tm))
    tm = ((pl.cdiv(M, n_steps) + 7) // 8) * 8
    grid = (pl.cdiv(M, tm),)

    xb = x2d.astype(jnp.bfloat16)   # halve activation DMA; f32 MXU accumulation in-kernel

    flops = 2 * M * (F * H1 + H1 * H2 + H2)
    bytes_accessed = (M * F * 2                      # bf16 activations in
                      + (F * H1 + H1 * H2) * 2       # bf16 weights
                      + small.size * 4 + 4           # packed biases / fc3 row
                      + M * OUT * 2)                 # bf16 packed output
    cost = pl.CostEstimate(flops=flops, transcendentals=M,
                           bytes_accessed=bytes_accessed)

    # Explicit VMEM budget (double-buffered tiles + resident weights + headroom).
    vmem_bytes = (2 * tm * F * 2 + 2 * tm * OUT * 2
                  + 2 * (F * H1 + H1 * H2) * 2
                  + 2 * small.size * 4
                  + (4 << 20))
    vmem_limit = int(min(max(vmem_bytes, 32 << 20), 48 << 20))

    packed = pl.pallas_call(
        _mlp_score_kernel,
        out_shape=jax.ShapeDtypeStruct((M, OUT), jnp.bfloat16),
        grid_spec=pltpu.PrefetchScalarGridSpec(
            num_scalar_prefetch=0,
            grid=grid,
            in_specs=[
                pl.BlockSpec((tm, F), lambda i: (i, 0)),         # activation row tile (bf16)
                pl.BlockSpec((F, H1), lambda i: (0, 0)),         # fc1 weight (bf16, resident)
                pl.BlockSpec((H1, H2), lambda i: (0, 0)),        # fc2 weight (bf16, resident)
                pl.BlockSpec((1, 768), lambda i: (0, 0)),        # [b1 | b2 | fc3 row] (f32)
                pl.BlockSpec(memory_space=pltpu.MemorySpace.SMEM),  # fc3 bias scalar
            ],
            out_specs=pl.BlockSpec((tm, OUT), lambda i: (i, 0)),  # lane-dense bf16 slab
        ),
        compiler_params=pltpu.CompilerParams(
            dimension_semantics=("parallel",),
            vmem_limit_bytes=vmem_limit),
        cost_estimate=cost,
    )(xb, w1, w2, small, b3)

    scores = packed[:, 0].astype(jnp.float32)
    mags = packed[:, 1].astype(jnp.float32)
    return scores, mags


def init_params(key, feature_size):
    """Xavier-uniform weights, zero biases, pre-packed for the kernel."""
    def xavier(k, shape):
        fan_in, fan_out = shape
        bound = (6.0 / (fan_in + fan_out)) ** 0.5
        return jax.random.uniform(k, shape, jnp.float32, -bound, bound)

    k1, k2, k3 = jax.random.split(key, 3)
    w1 = xavier(k1, (feature_size, 512)).astype(jnp.bfloat16)
    w2 = xavier(k2, (512, 128)).astype(jnp.bfloat16)
    w3 = xavier(k3, (128, 1))
    b1 = jnp.zeros((1, 512), jnp.float32)
    b2 = jnp.zeros((1, 128), jnp.float32)
    small = jnp.concatenate([b1, b2, w3.reshape(1, 128)], axis=1)  # (1, 768) f32
    b3 = jnp.zeros((1,), jnp.float32)                              # fc3 bias (SMEM scalar)
    return (w1, w2, small, b3)


def _topk_branch(scores_b, feats_flat, mem_flat, mags_drop, k_vec,
                 n_size, ncrops, t, f, k_max):
    """Vectorized fixed-K top-k selection for one (normal/abnormal) branch."""
    feats_p = feats_flat.reshape(n_size, ncrops, t, f).transpose(1, 0, 2, 3)
    mem_p = mem_flat.reshape(n_size, ncrops, t, f).transpose(1, 0, 2, 3)

    _, idx = jax.lax.top_k(mags_drop, k_max)                       # (n, K)
    valid = (jnp.arange(k_max)[None, :] < k_vec[:, None]).astype(jnp.float32)
    kf = k_vec.astype(jnp.float32)[:, None]                        # (n, 1)

    # mean of selected scores per video
    sc = jnp.take_along_axis(scores_b[..., 0], idx, axis=1)        # (n, K)
    score_sel = jnp.sum(sc * valid, axis=1, keepdims=True) / kf    # (n, 1)

    idx_e = jnp.broadcast_to(idx[None, :, :, None], (ncrops, n_size, k_max, f))
    w = valid[None, :, :, None]                                    # (1, n, K, 1)

    feats_g = jnp.take_along_axis(feats_p, idx_e, axis=2)          # (nc, n, K, f)
    feats_mean = jnp.sum(feats_g * w, axis=2) / kf[None]           # (nc, n, f)
    feat_sel = jnp.sqrt(jnp.sum(feats_mean * feats_mean, axis=-1)) # (nc, n)
    feat_sel = feat_sel.T.reshape(-1)                              # (n*nc,)

    mem_g = jnp.take_along_axis(mem_p, idx_e, axis=2)              # (nc, n, K, f)
    mem_mean = (jnp.sum(mem_g * w, axis=2) / kf[None]).transpose(1, 0, 2)
    mem_mean = mem_mean.reshape(-1, f)                             # (n*nc, f)
    return score_sel, feat_sel, mem_mean


@functools.partial(jax.jit, static_argnums=(3,))
def model_forward(inputs, mask, params, batch_size):
    bs, ncrops, t, f = inputs.shape
    out = inputs.reshape(-1, t, f)                       # (bs*ncrops, t, f)
    # TODO(synk): LGTRM `Aggregate(out, mask)` is undefined in the reference; treated as identity.
    features = out                                       # Dropout(0.7) eval == identity

    M = bs * ncrops * t
    scores_flat, mags_flat = mlp_scores_and_magnitudes(
        features.reshape(M, f), params)

    scores = scores_flat.reshape(bs, ncrops, t).mean(axis=1)[..., None]  # (bs, t, 1)
    if bs == 1:
        return scores

    normal_features = features[:batch_size * 10]
    mem_nor_f = out[:batch_size * 10]
    normal_scores = scores[:batch_size]
    abnormal_features = features[batch_size * 10:]
    mem_ab_f = out[batch_size * 10:]
    abnormal_scores = scores[batch_size:]

    feat_magnitudes = mags_flat.reshape(bs, ncrops, t).mean(axis=1)       # (bs, t)
    nfea_magnitudes = feat_magnitudes[:batch_size]
    afea_magnitudes = feat_magnitudes[batch_size:]
    n_size = batch_size

    mask2d = mask.mean(axis=1).reshape(-1, mask.shape[-1])                # (bs, t)
    k_tot = (jnp.sum(mask2d, axis=1) // 16 + 1).astype(jnp.int32)
    k_nor = k_tot[:batch_size]
    k_abn = k_tot[batch_size:]
    k_max = t // 16 + 1                                                   # static upper bound

    # dropout on select_idx in eval mode == identity
    afea_drop = afea_magnitudes * mask2d[batch_size:, :]
    nfea_drop = nfea_magnitudes * mask2d[:batch_size, :]

    score_abnormal, feat_select_abn, total_mem_ab_f = _topk_branch(
        abnormal_scores, abnormal_features, mem_ab_f, afea_drop, k_abn,
        n_size, ncrops, t, f, k_max)
    score_normal, feat_select_normal, total_mem_nor_f = _topk_branch(
        normal_scores, normal_features, mem_nor_f, nfea_drop, k_nor,
        n_size, ncrops, t, f, k_max)

    # TODO(synk): ENPM `memory` module is undefined in the reference; losses returned as zeros.
    _mem_input = jnp.concatenate((total_mem_nor_f, total_mem_ab_f), axis=0)
    s_loss = jnp.zeros((), jnp.float32)
    c_loss = jnp.zeros((), jnp.float32)
    u_loss = jnp.zeros((), jnp.float32)

    return (score_abnormal, score_normal, feat_select_abn, feat_select_normal,
            scores, s_loss, c_loss, u_loss)


if __name__ == "__main__":
    key = jax.random.PRNGKey(0)
    batch_size = 1          # args.batch_size
    bs = 2 * batch_size     # normal videos first, abnormal second
    ncrops = 10             # required by the `batch_size * 10` slicing
    t = 16
    feature_size = 256      # args.feature_size (small for the test)

    kp, ki = jax.random.split(key)
    params = init_params(kp, feature_size)
    inputs = jax.random.normal(ki, (bs, ncrops, t, feature_size), jnp.float32)
    mask = jnp.ones((bs, ncrops, 1, t), jnp.float32)

    outs = model_forward(inputs, mask, params, batch_size)
    outs = jax.block_until_ready(outs)
    print("KERNEL_OK")
</pallas_src>

<mosaic_0001>
module attributes {stable_mosaic.version = 11 : i64} {
  func.func @_mlp_score_kernel(%arg0: i32, %arg1: memref<160x256xbf16, #tpu.memory_space<vmem>>, %arg2: memref<256x512xbf16, #tpu.memory_space<vmem>>, %arg3: memref<512x128xbf16, #tpu.memory_space<vmem>>, %arg4: memref<1x768xf32, #tpu.memory_space<vmem>>, %arg5: memref<1xf32, #tpu.memory_space<smem>>, %arg6: memref<160x128xbf16, #tpu.memory_space<vmem>>) attributes {dimension_semantics = [#tpu.dimension_semantics<parallel>], iteration_bounds = array<i64: 2>, scalar_prefetch = 0 : i64, scratch_operands = 0 : i64, tpu.core_type = #tpu.core_type<tc>, window_params = [{transform_indices = @transform_0, window_bounds = array<i64: 160, 256>}, {pipeline_mode = #tpu.pipeline_mode<synchronous>, transform_indices = @transform_1, window_bounds = array<i64: 256, 512>}, {pipeline_mode = #tpu.pipeline_mode<synchronous>, transform_indices = @transform_2, window_bounds = array<i64: 512, 128>}, {pipeline_mode = #tpu.pipeline_mode<synchronous>, transform_indices = @transform_3, window_bounds = array<i64: 1, 768>}, {transform_indices = @transform_4, window_bounds = array<i64: 1>}, {transform_indices = @transform_5, window_bounds = array<i64: 160, 128>}]} {
    %c0 = arith.constant 0 : index
    %c0_0 = arith.constant 0 : index
    %0 = vector.load %arg1[%c0, %c0_0] : memref<160x256xbf16, #tpu.memory_space<vmem>>, vector<160x256xbf16>
    %c0_1 = arith.constant 0 : index
    %c0_2 = arith.constant 0 : index
    %1 = vector.load %arg4[%c0_1, %c0_2] : memref<1x768xf32, #tpu.memory_space<vmem>>, vector<1x512xf32>
    %c0_3 = arith.constant 0 : index
    %c512 = arith.constant 512 : index
    %2 = vector.load %arg4[%c0_3, %c512] : memref<1x768xf32, #tpu.memory_space<vmem>>, vector<1x128xf32>
    %c0_4 = arith.constant 0 : index
    %c640 = arith.constant 640 : index
    %3 = vector.load %arg4[%c0_4, %c640] : memref<1x768xf32, #tpu.memory_space<vmem>>, vector<1x128xf32>
    %c0_5 = arith.constant 0 : index
    %4 = memref.load %arg5[%c0_5] : memref<1xf32, #tpu.memory_space<smem>>
    %c0_6 = arith.constant 0 : index
    %c0_7 = arith.constant 0 : index
    %5 = vector.load %arg2[%c0_6, %c0_7] : memref<256x512xbf16, #tpu.memory_space<vmem>>, vector<256x512xbf16>
    %cst = arith.constant dense<0.000000e+00> : vector<160x512xf32>
    %6 = tpu.matmul %0, %5, %cst {dimension_numbers = #tpu.dot_dimension_numbers<[1], [0], [0], [1], [0, 0, 1, 1], [], []>} : vector<160x256xbf16>, vector<256x512xbf16>, vector<160x512xf32> -> vector<160x512xf32>
    %7 = vector.broadcast %1 : vector<1x512xf32> to vector<160x512xf32>
    %8 = arith.addf %6, %7 : vector<160x512xf32>
    %cst_8 = arith.constant 0.000000e+00 : f32
    %9 = vector.broadcast %cst_8 : f32 to vector<160x512xf32>
    %10 = arith.maximumf %8, %9 : vector<160x512xf32>
    %11 = arith.truncf %10 : vector<160x512xf32> to vector<160x512xbf16>
    %c0_9 = arith.constant 0 : index
    %c0_10 = arith.constant 0 : index
    %12 = vector.load %arg3[%c0_9, %c0_10] : memref<512x128xbf16, #tpu.memory_space<vmem>>, vector<512x128xbf16>
    %cst_11 = arith.constant dense<0.000000e+00> : vector<160x128xf32>
    %13 = tpu.matmul %11, %12, %cst_11 {dimension_numbers = #tpu.dot_dimension_numbers<[1], [0], [0], [1], [0, 0, 1, 1], [], []>} : vector<160x512xbf16>, vector<512x128xbf16>, vector<160x128xf32> -> vector<160x128xf32>
    %14 = vector.broadcast %2 : vector<1x128xf32> to vector<160x128xf32>
    %15 = arith.addf %13, %14 : vector<160x128xf32>
    %cst_12 = arith.constant 0.000000e+00 : f32
    %16 = vector.broadcast %cst_12 : f32 to vector<160x128xf32>
    %17 = arith.maximumf %15, %16 : vector<160x128xf32>
    %18 = vector.broadcast %3 : vector<1x128xf32> to vector<160x128xf32>
    %19 = arith.mulf %17, %18 : vector<160x128xf32>
    %cst_13 = arith.constant dense<0.000000e+00> : vector<160xf32>
    %20 = vector.multi_reduction <add>, %19, %cst_13 [1] : vector<160x128xf32> to vector<160xf32>
    %21 = vector.shape_cast %20 : vector<160xf32> to vector<160x1xf32>
    %22 = vector.broadcast %4 : f32 to vector<160x1xf32>
    %23 = arith.addf %21, %22 : vector<160x1xf32>
    %24 = arith.negf %23 : vector<160x1xf32>
    %25 = math.exp %24 : vector<160x1xf32>
    %cst_14 = arith.constant 1.000000e+00 : f32
    %26 = vector.broadcast %cst_14 : f32 to vector<160x1xf32>
    %27 = arith.addf %26, %25 : vector<160x1xf32>
    %28 = arith.divf %26, %27 : vector<160x1xf32>
    %29 = arith.extf %0 : vector<160x256xbf16> to vector<160x256xf32>
    %30 = arith.mulf %29, %29 : vector<160x256xf32>
    %cst_15 = arith.constant dense<0.000000e+00> : vector<160xf32>
    %31 = vector.multi_reduction <add>, %30, %cst_15 [1] : vector<160x256xf32> to vector<160xf32>
    %32 = vector.shape_cast %31 : vector<160xf32> to vector<160x1xf32>
    %33 = math.sqrt %32 : vector<160x1xf32>
    %34 = tpu.iota {dimensions = array<i32: 1>} : vector<160x128xi32>
    %c0_i32 = arith.constant 0 : i32
    %35 = vector.broadcast %c0_i32 : i32 to vector<160x128xi32>
    %36 = arith.cmpi eq, %34, %35 : vector<160x128xi32>
    %c1_i32 = arith.constant 1 : i32
    %37 = vector.broadcast %c1_i32 : i32 to vector<160x128xi32>
    %38 = arith.cmpi eq, %34, %37 : vector<160x128xi32>
    %cst_16 = arith.constant 0.000000e+00 : f32
    %39 = vector.shape_cast %33 : vector<160x1xf32> to vector<160x1xf32>
    %40 = vector.broadcast %39 : vector<160x1xf32> to vector<160x128xf32>
    %41 = vector.broadcast %cst_16 : f32 to vector<160x128xf32>
    %42 = arith.select %38, %40, %41 : vector<160x128xi1>, vector<160x128xf32>
    %43 = vector.shape_cast %28 : vector<160x1xf32> to vector<160x1xf32>
    %44 = vector.broadcast %43 : vector<160x1xf32> to vector<160x128xf32>
    %45 = arith.select %36, %44, %42 : vector<160x128xi1>, vector<160x128xf32>
    %46 = arith.truncf %45 : vector<160x128xf32> to vector<160x128xbf16>
    %c0_17 = arith.constant 0 : index
    %c0_18 = arith.constant 0 : index
    %47 = vector.load %arg6[%c0_17, %c0_18] : memref<160x128xbf16, #tpu.memory_space<vmem>>, vector<160x128xbf16>
    tpu.vector_store %arg6[%c0_17, %c0_18], %46 {strides = array<i32>} : memref<160x128xbf16, #tpu.memory_space<vmem>>, vector<160x128xbf16>,
    return
  }
  func.func @transform_0(%arg0: i32) -> (i32, i32) {
    %c0_i32 = arith.constant 0 : i32
    %c0_i32_0 = arith.constant 0 : i32
    return %arg0, %c0_i32 : i32, i32
  }
  func.func @transform_1(%arg0: i32) -> (i32, i32) {
    %c0_i32 = arith.constant 0 : i32
    %c0_i32_0 = arith.constant 0 : i32
    %c0_i32_1 = arith.constant 0 : i32
    return %c0_i32, %c0_i32_0 : i32, i32
  }
  func.func @transform_2(%arg0: i32) -> (i32, i32) {
    %c0_i32 = arith.constant 0 : i32
    %c0_i32_0 = arith.constant 0 : i32
    %c0_i32_1 = arith.constant 0 : i32
    return %c0_i32, %c0_i32_0 : i32, i32
  }
  func.func @transform_3(%arg0: i32) -> (i32, i32) {
    %c0_i32 = arith.constant 0 : i32
    %c0_i32_0 = arith.constant 0 : i32
    %c0_i32_1 = arith.constant 0 : i32
    return %c0_i32, %c0_i32_0 : i32, i32
  }
  func.func @transform_4(%arg0: i32) -> i32 {
    %c0_i32 = arith.constant 0 : i32
    %c0_i32_0 = arith.constant 0 : i32
    return %c0_i32 : i32
  }
  func.func @transform_5(%arg0: i32) -> (i32, i32) {
    %c0_i32 = arith.constant 0 : i32
    %c0_i32_0 = arith.constant 0 : i32
    return %arg0, %c0_i32 : i32, i32
  }
}

</mosaic_0001>

<llo_original>
// kernel: model_forward.1
$region0: #{model_forward.1}
  #allocation0 [shape = 'u32[]', space=smem, size = 0x4, offset = 0x4, fixed_abs, tag = 'smem constant byte address 0x4 - core index']
  #allocation1 [shape = 'u32[144,128]{1,0:T(1,128)}', space=vmem, size = 0x12000, scoped, tag = 'internal scratch']
  #allocation2 [shape = 'f32[1]{0:T(128)S(6)}', space=smem, size = 0x200, scoped, tag = 'scoped memory for model_forward.1']
  %s0 = inlined_call_operand.vmem [shape: bf16[320,256], index: 0, kind: input, shape index: {}]
  %s1 = inlined_call_operand.vmem [shape: bf16[256,512], index: 1, kind: input, shape index: {}]
  %s2 = inlined_call_operand.vmem [shape: bf16[512,128], index: 2, kind: input, shape index: {}]
  %s3 = inlined_call_operand.vmem [shape: f32[1,768], index: 3, kind: input, shape index: {}]
  %s4 = inlined_call_operand.<no memory space> [shape: f32[1], index: 4, kind: input, shape index: {}]
  %s5 = inlined_call_operand.vmem [shape: bf16[320,128], index: 5, kind: output, shape index: {}]
  %s6 = sld [smem:[#allocation0]]
  $region53: #{model_forward.1} parent=0
    _
  %s8 = ssub.s32 1, %s6
  %s9 = scalar_select 0, %s8, %s6
  %10 = sst [smem:[#allocation2]] %s4
  loop: start=0, step=1, limit=4
  $region2: #{model_forward.1} parent=0 // loop_pre_header
    _
  $region3: #{model_forward.1} parent=0 // loop_header
    %s12 = sphi 0, %s16
    %p13 = scmp.ge.s32.totalorder %s12, 4
    %s22 = sphi 0, %s24
    %s25 = sphi 0, %s22
    %s26 = sphi 0, %s25
    %s42 = sphi 0, %s26
    %s46 = sphi 0, %s46
    %s48 = sphi 0, %s46
    %s49 = sphi 0, %s48
    %s63 = sphi 0, %s49
    %s67 = sphi 0, %s67
    %s69 = sphi 0, %s67
    %s70 = sphi 0, %s69
    %s84 = sphi 0, %s70
    %s88 = sphi 0, %s88
    %s90 = sphi 0, %s88
    %s91 = sphi 0, %s90
    %s105 = sphi 0, %s91
    %s109 = sphi 0, %s109
    %s111 = sphi 0, %s109
    %s112 = sphi 0, %s111
    %s126 = sphi 0, %s112
    %s132 = sphi 0, %s134
    %s135 = sphi 0, %s132
    %s136 = sphi 0, %s135
    %s152 = sphi 0, %s136
  $region4: #{model_forward.1} parent=0 // loop_header_branch
    %15 = sbr.rel (%p13) target = $region8
  $region5: #{model_forward.1} parent=0 // loop_body
    %s17 = ssub.s32 %s12, 1
    %s18 = ssub.s32 %s12, 2
    %s19 = sadd.s32 %s12, 1
    %s20 = ssub.s32 %s12, %s19
    %p21 = scmp.eq.s32.totalorder %s20, 0
    %s23 = sadd.s32 %s22, 1
    %s24 = scalar_select %p21, %s22, %s23
    %p27 = pneg %p21
    %p28 = scmp.eq.s32.totalorder %s12, 1
    %p29 = por %p27, %p28
    %p30 = scmp.ne.s32.totalorder %s22, %s25
    %p31 = scmp.eq.s32.totalorder %s12, 0
    %p32 = por %p30, %p31
    %p33 = scmp.ne.s32.totalorder %s22, %s25
    %p34 = scmp.eq.s32.totalorder %s17, 1
    %p35 = por %p33, %p34
    %p36 = scmp.ne.s32.totalorder %s25, %s26
    %p37 = scmp.eq.s32.totalorder %s17, 0
    %p38 = por %p36, %p37
    %p39 = scmp.ne.s32.totalorder %s25, %s26
    %p40 = scmp.eq.s32.totalorder %s18, 1
    %p41 = por %p39, %p40
    %p43 = scmp.ne.s32.totalorder %s26, %s42
    %p44 = scmp.eq.s32.totalorder %s18, 0
    %p45 = por %p43, %p44
    %s47 = sadd.s32 %s46, 1
    %p50 = scmp.eq.s32.totalorder %s12, 1
    %p51 = scmp.ne.s32.totalorder %s46, %s48
    %p52 = scmp.eq.s32.totalorder %s12, 0
    %p53 = por %p51, %p52
    %p54 = scmp.ne.s32.totalorder %s46, %s48
    %p55 = scmp.eq.s32.totalorder %s17, 1
    %p56 = por %p54, %p55
    %p57 = scmp.ne.s32.totalorder %s48, %s49
    %p58 = scmp.eq.s32.totalorder %s17, 0
    %p59 = por %p57, %p58
    %p60 = scmp.ne.s32.totalorder %s48, %s49
    %p61 = scmp.eq.s32.totalorder %s18, 1
    %p62 = por %p60, %p61
    %p64 = scmp.ne.s32.totalorder %s49, %s63
    %p65 = scmp.eq.s32.totalorder %s18, 0
    %p66 = por %p64, %p65
    %s68 = sadd.s32 %s67, 1
    %p71 = scmp.eq.s32.totalorder %s12, 1
    %p72 = scmp.ne.s32.totalorder %s67, %s69
    %p73 = scmp.eq.s32.totalorder %s12, 0
    %p74 = por %p72, %p73
    %p75 = scmp.ne.s32.totalorder %s67, %s69
    %p76 = scmp.eq.s32.totalorder %s17, 1
    %p77 = por %p75, %p76
    %p78 = scmp.ne.s32.totalorder %s69, %s70
    %p79 = scmp.eq.s32.totalorder %s17, 0
    %p80 = por %p78, %p79
    %p81 = scmp.ne.s32.totalorder %s69, %s70
    %p82 = scmp.eq.s32.totalorder %s18, 1
    %p83 = por %p81, %p82
    %p85 = scmp.ne.s32.totalorder %s70, %s84
    %p86 = scmp.eq.s32.totalorder %s18, 0
    %p87 = por %p85, %p86
    %s89 = sadd.s32 %s88, 1
    %p92 = scmp.eq.s32.totalorder %s12, 1
    %p93 = scmp.ne.s32.totalorder %s88, %s90
    %p94 = scmp.eq.s32.totalorder %s12, 0
    %p95 = por %p93, %p94
    %p96 = scmp.ne.s32.totalorder %s88, %s90
    %p97 = scmp.eq.s32.totalorder %s17, 1
    %p98 = por %p96, %p97
    %p99 = scmp.ne.s32.totalorder %s90, %s91
    %p100 = scmp.eq.s32.totalorder %s17, 0
    %p101 = por %p99, %p100
    %p102 = scmp.ne.s32.totalorder %s90, %s91
    %p103 = scmp.eq.s32.totalorder %s18, 1
    %p104 = por %p102, %p103
    %p106 = scmp.ne.s32.totalorder %s91, %s105
    %p107 = scmp.eq.s32.totalorder %s18, 0
    %p108 = por %p106, %p107
    %s110 = sadd.s32 %s109, 1
    %p113 = scmp.eq.s32.totalorder %s12, 1
    %p114 = scmp.ne.s32.totalorder %s109, %s111
    %p115 = scmp.eq.s32.totalorder %s12, 0
    %p116 = por %p114, %p115
    %p117 = scmp.ne.s32.totalorder %s109, %s111
    %p118 = scmp.eq.s32.totalorder %s17, 1
    %p119 = por %p117, %p118
    %p120 = scmp.ne.s32.totalorder %s111, %s112
    %p121 = scmp.eq.s32.totalorder %s17, 0
    %p122 = por %p120, %p121
    %p123 = scmp.ne.s32.totalorder %s111, %s112
    %p124 = scmp.eq.s32.totalorder %s18, 1
    %p125 = por %p123, %p124
    %p127 = scmp.ne.s32.totalorder %s112, %s126
    %p128 = scmp.eq.s32.totalorder %s18, 0
    %p129 = por %p127, %p128
    %s130 = ssub.s32 %s12, %s19
    %p131 = scmp.eq.s32.totalorder %s130, 0
    %s133 = sadd.s32 %s132, 1
    %s134 = scalar_select %p131, %s132, %s133
    %p137 = pneg %p131
    %p138 = scmp.eq.s32.totalorder %s12, 1
    %p139 = por %p137, %p138
    %p140 = scmp.ne.s32.totalorder %s132, %s135
    %p141 = scmp.eq.s32.totalorder %s12, 0
    %p142 = por %p140, %p141
    %p143 = scmp.ne.s32.totalorder %s132, %s135
    %p144 = scmp.eq.s32.totalorder %s17, 1
    %p145 = por %p143, %p144
    %p146 = scmp.ne.s32.totalorder %s135, %s136
    %p147 = scmp.eq.s32.totalorder %s17, 0
    %p148 = por %p146, %p147
    %p149 = scmp.ne.s32.totalorder %s135, %s136
    %p150 = scmp.eq.s32.totalorder %s18, 1
    %p151 = por %p149, %p150
    %p153 = scmp.ne.s32.totalorder %s136, %s152
    %p154 = scmp.eq.s32.totalorder %s18, 0
    %p155 = por %p153, %p154
    %p156 = scmp.le.s32.totalorder 1, %s12
    %p157 = scmp.lt.s32.totalorder %s12, 3
    %p158 = pnand %p156, %p157
    %p159 = pneg %p158
    // Predicated region
    $region9: #{model_forward.1} parent=5 // pred_check
      _
    $region10: #{model_forward.1} parent=5 // pred_check_branch
      %161 = sbr.rel (%p158) target = $region12
    $region11: #{model_forward.1} parent=5 // pred_region
      %s162 = ssub.s32 %s12, 1
      // Predicated region
      $region13: #{model_forward.1} parent=11 // pred_check
        %p163 = pneg %p59
      $region14: #{model_forward.1} parent=11 // pred_check_branch
        %165 = sbr.rel (%p163) target = $region16
      $region15: #{model_forward.1} parent=11 // pred_region
        _
      $region16: #{model_forward.1} parent=11 // pred_fallthru
        _
      // Predicated region
      $region17: #{model_forward.1} parent=11 // pred_check
        %p166 = pneg %p80
      $region18: #{model_forward.1} parent=11 // pred_check_branch
        %168 = sbr.rel (%p166) target = $region20
      $region19: #{model_forward.1} parent=11 // pred_region
        _
      $region20: #{model_forward.1} parent=11 // pred_fallthru
        _
      // Predicated region
      $region21: #{model_forward.1} parent=11 // pred_check
        %p169 = pneg %p101
      $region22: #{model_forward.1} parent=11 // pred_check_branch
        %171 = sbr.rel (%p169) target = $region24
      $region23: #{model_forward.1} parent=11 // pred_region
        _
      $region24: #{model_forward.1} parent=11 // pred_fallthru
        _
      // Predicated region
      $region25: #{model_forward.1} parent=11 // pred_check
        %p172 = pneg %p122
      $region26: #{model_forward.1} parent=11 // pred_check_branch
        %174 = sbr.rel (%p172) target = $region28
      $region27: #{model_forward.1} parent=11 // pred_region
        _
      $region28: #{model_forward.1} parent=11 // pred_fallthru
        _
    $region12: #{model_forward.1} parent=5 // pred_fallthru
      _
    %p175 = scmp.lt.s32.totalorder %s12, 2
    // Predicated region
    $region29: #{model_forward.1} parent=5 // pred_check
      %p176 = pneg %p175
    $region30: #{model_forward.1} parent=5 // pred_check_branch
      %178 = sbr.rel (%p176) target = $region32
    $region31: #{model_forward.1} parent=5 // pred_region
      // Predicated region
      $region33: #{model_forward.1} parent=31 // pred_check
        %p179 = pneg %p32
      $region34: #{model_forward.1} parent=31 // pred_check_branch
        %181 = sbr.rel (%p179) target = $region36
      $region35: #{model_forward.1} parent=31 // pred_region
        %s182 = smul.u32 20, %s12
        %p183 = scmp.lt.s32.totalorder %s182, 39
        %s184 = scalar_select %p183, %s182, 39
        %s185 = smul.addr %s184, 2
        %s186 = smul.addr %s185, 4
        %s187 = scalar_lea.vmem %s0, %s186
        %s188 = smul.u32 20, %s12
      $region36: #{model_forward.1} parent=31 // pred_fallthru
        _
    $region32: #{model_forward.1} parent=5 // pred_fallthru
      _
    %p189 = scmp.le.s32.totalorder 1, %s12
    %p190 = scmp.lt.s32.totalorder %s12, 3
    %p191 = pnand %p189, %p190
    %p192 = pneg %p191
    // Predicated region
    $region37: #{model_forward.1} parent=5 // pred_check
      _
    $region38: #{model_forward.1} parent=5 // pred_check_branch
      %194 = sbr.rel (%p191) target = $region40
    $region39: #{model_forward.1} parent=5 // pred_region
      %s195 = ssub.s32 %s12, 1
      %s196 = smul.u32 20, %s17
      %p197 = scmp.lt.s32.totalorder %s196, 39
      %s198 = scalar_select %p197, %s196, 39
      %s199 = smul.addr %s198, 2
      %s200 = smul.addr %s199, 4
      %s201 = scalar_lea.vmem %s0, %s200
      %p202 = pneg %p38
      %p203 = pneg %p35
      %p204 = pneg %p59
      %p205 = pneg %p56
      %p206 = pneg %p80
      %p207 = pneg %p77
      %p208 = pneg %p101
      %p209 = pneg %p98
      %p210 = pneg %p122
      %p211 = pneg %p119
      %p212 = pneg %p148
      %p213 = pneg %p145
      %s214 = smul.u32 20, %s17
      %p215 = scmp.lt.s32.totalorder %s214, 39
      %s216 = scalar_select %p215, %s214, 39
      %s217 = smul.addr %s216, 4
      %s218 = scalar_lea.vmem %s5, %s217
      %s219 = smul.u32 20, %s17
      %p220 = scmp.lt.s32.totalorder %s219, 39
      %s221 = scalar_select %p220, %s219, 39
      %s222 = smul.addr %s221, 2
      %s223 = smul.addr %s222, 4
      %s224 = scalar_lea.vmem %s0, %s223
      %s225 = smul.u32 20, %s17
      %s226 = smul.u32 20, %s17
      %p227 = scmp.lt.s32.totalorder %s226, 39
      %s228 = scalar_select %p227, %s226, 39
      %s229 = smul.addr %s228, 4
      %s230 = scalar_lea.vmem %s5, %s229
      %s231 = smul.u32 20, %s17
      %v233 = vld [vmem:[%s224] sm:$0xff]
      %v234 = vld [vmem:[%s224 + $0x8] sm:$0xff]
      %v235 = vld [vmem:[%s224 + $0x10] sm:$0xff]
      %v236 = vld [vmem:[%s224 + $0x18] sm:$0xff]
      %v237 = vld [vmem:[%s224 + $0x20] sm:$0xff]
      %v238 = vld [vmem:[%s224 + $0x28] sm:$0xff]
      %v239 = vld [vmem:[%s224 + $0x30] sm:$0xff]
      %v240 = vld [vmem:[%s224 + $0x38] sm:$0xff]
      %v241 = vld [vmem:[%s224 + $0x40] sm:$0xff]
      %v242 = vld [vmem:[%s224 + $0x48] sm:$0xff]
      %v243 = vld [vmem:[%s224 + $0x50] sm:$0xff]
      %v244 = vld [vmem:[%s224 + $0x58] sm:$0xff]
      %v245 = vld [vmem:[%s224 + $0x60] sm:$0xff]
      %v246 = vld [vmem:[%s224 + $0x68] sm:$0xff]
      %v247 = vld [vmem:[%s224 + $0x70] sm:$0xff]
      %v248 = vld [vmem:[%s224 + $0x78] sm:$0xff]
      %v249 = vld [vmem:[%s224 + $0x80] sm:$0xff]
      %v250 = vld [vmem:[%s224 + $0x88] sm:$0xff]
      %v251 = vld [vmem:[%s224 + $0x90] sm:$0xff]
      %v252 = vld [vmem:[%s224 + $0x98] sm:$0xff]
      %v253 = vld [vmem:[%s3] sm:$0xf]
      %v254 = vld [vmem:[%s3 + $0x4] sm:$0x1]
      %v255 = vld [vmem:[%s3 + $0x5] sm:$0x1]
      %s256 = sld [smem:[#allocation2]]
      %v257 = vld [vmem:[%s1] sm:$0xff]
      %v258 = vld [vmem:[%s1 + $0x8] sm:$0xff]
      %v259 = vld [vmem:[%s1 + $0x10] sm:$0xff]
      %v260 = vld [vmem:[%s1 + $0x18] sm:$0xff]
      %v261 = vld [vmem:[%s1 + $0x20] sm:$0xff]
      %v262 = vld [vmem:[%s1 + $0x28] sm:$0xff]
      %v263 = vld [vmem:[%s1 + $0x30] sm:$0xff]
      %v264 = vld [vmem:[%s1 + $0x38] sm:$0xff]
      %v265 = vld [vmem:[%s1 + $0x40] sm:$0xff]
      %v266 = vld [vmem:[%s1 + $0x48] sm:$0xff]
      %v267 = vld [vmem:[%s1 + $0x50] sm:$0xff]
      %v268 = vld [vmem:[%s1 + $0x58] sm:$0xff]
      %v269 = vld [vmem:[%s1 + $0x60] sm:$0xff]
      %v270 = vld [vmem:[%s1 + $0x68] sm:$0xff]
      %v271 = vld [vmem:[%s1 + $0x70] sm:$0xff]
      %v272 = vld [vmem:[%s1 + $0x78] sm:$0xff]
      %v273 = vld [vmem:[%s1 + $0x80] sm:$0xff]
      %v274 = vld [vmem:[%s1 + $0x88] sm:$0xff]
      %v275 = vld [vmem:[%s1 + $0x90] sm:$0xff]
      %v276 = vld [vmem:[%s1 + $0x98] sm:$0xff]
      %v277 = vld [vmem:[%s1 + $0xa0] sm:$0xff]
      %v278 = vld [vmem:[%s1 + $0xa8] sm:$0xff]
      %v279 = vld [vmem:[%s1 + $0xb0] sm:$0xff]
      %v280 = vld [vmem:[%s1 + $0xb8] sm:$0xff]
      %v281 = vld [vmem:[%s1 + $0xc0] sm:$0xff]
      %v282 = vld [vmem:[%s1 + $0xc8] sm:$0xff]
      %v283 = vld [vmem:[%s1 + $0xd0] sm:$0xff]
      %v284 = vld [vmem:[%s1 + $0xd8] sm:$0xff]
      %v285 = vld [vmem:[%s1 + $0xe0] sm:$0xff]
      %v286 = vld [vmem:[%s1 + $0xe8] sm:$0xff]
      %v287 = vld [vmem:[%s1 + $0xf0] sm:$0xff]
      %v288 = vld [vmem:[%s1 + $0xf8] sm:$0xff]
      %v289 = vld [vmem:[%s1 + $0x100] sm:$0xff]
      %v290 = vld [vmem:[%s1 + $0x108] sm:$0xff]
      %v291 = vld [vmem:[%s1 + $0x110] sm:$0xff]
      %v292 = vld [vmem:[%s1 + $0x118] sm:$0xff]
      %v293 = vld [vmem:[%s1 + $0x120] sm:$0xff]
      %v294 = vld [vmem:[%s1 + $0x128] sm:$0xff]
      %v295 = vld [vmem:[%s1 + $0x130] sm:$0xff]
      %v296 = vld [vmem:[%s1 + $0x138] sm:$0xff]
      %v297 = vld [vmem:[%s1 + $0x140] sm:$0xff]
      %v298 = vld [vmem:[%s1 + $0x148] sm:$0xff]
      %v299 = vld [vmem:[%s1 + $0x150] sm:$0xff]
      %v300 = vld [vmem:[%s1 + $0x158] sm:$0xff]
      %v301 = vld [vmem:[%s1 + $0x160] sm:$0xff]
      %v302 = vld [vmem:[%s1 + $0x168] sm:$0xff]
      %v303 = vld [vmem:[%s1 + $0x170] sm:$0xff]
      %v304 = vld [vmem:[%s1 + $0x178] sm:$0xff]
      %v305 = vld [vmem:[%s1 + $0x180] sm:$0xff]
      %v306 = vld [vmem:[%s1 + $0x188] sm:$0xff]
      %v307 = vld [vmem:[%s1 + $0x190] sm:$0xff]
      %v308 = vld [vmem:[%s1 + $0x198] sm:$0xff]
      %v309 = vld [vmem:[%s1 + $0x1a0] sm:$0xff]
      %v310 = vld [vmem:[%s1 + $0x1a8] sm:$0xff]
      %v311 = vld [vmem:[%s1 + $0x1b0] sm:$0xff]
      %v312 = vld [vmem:[%s1 + $0x1b8] sm:$0xff]
      %v313 = vld [vmem:[%s1 + $0x1c0] sm:$0xff]
      %v314 = vld [vmem:[%s1 + $0x1c8] sm:$0xff]
      %v315 = vld [vmem:[%s1 + $0x1d0] sm:$0xff]
      %v316 = vld [vmem:[%s1 + $0x1d8] sm:$0xff]
      %v317 = vld [vmem:[%s1 + $0x1e0] sm:$0xff]
      %v318 = vld [vmem:[%s1 + $0x1e8] sm:$0xff]
      %v319 = vld [vmem:[%s1 + $0x1f0] sm:$0xff]
      %v320 = vld [vmem:[%s1 + $0x1f8] sm:$0xff]
      %v322 = vlaneseq
      %v323 = vshrl.u32 %v322, 7
      %v324 = vsub.s32 0, %v323
      %v325 = vrot.slane %v253, %v324
      %v326 = vlaneseq
      %v327 = vshrl.u32 %v326, 7
      %v328 = vsub.s32 1, %v327
      %v329 = vrot.slane %v253, %v328
      %v330 = vlaneseq
      %v331 = vshrl.u32 %v330, 7
      %v332 = vsub.s32 2, %v331
      %v333 = vrot.slane %v253, %v332
      %v334 = vlaneseq
      %v335 = vshrl.u32 %v334, 7
      %v336 = vsub.s32 3, %v335
      %v337 = vrot.slane %v253, %v336
      %v362 = vunpack.c.l.b16 %v233
      %v363 = vunpack.c.h.b16 %v233
      %v364 = vunpack.c.l.b16 %v234
      %v365 = vunpack.c.h.b16 %v234
      %v366 = vunpack.c.l.b16 %v235
      %v367 = vunpack.c.h.b16 %v235
      %v368 = vunpack.c.l.b16 %v236
      %v369 = vunpack.c.h.b16 %v236
      %v370 = vunpack.c.l.b16 %v237
      %v371 = vunpack.c.h.b16 %v237
      %v372 = vunpack.c.l.b16 %v238
      %v373 = vunpack.c.h.b16 %v238
      %v374 = vunpack.c.l.b16 %v239
      %v375 = vunpack.c.h.b16 %v239
      %v376 = vunpack.c.l.b16 %v240
      %v377 = vunpack.c.h.b16 %v240
      %v378 = vunpack.c.l.b16 %v241
      %v379 = vunpack.c.h.b16 %v241
      %v380 = vunpack.c.l.b16 %v242
      %v381 = vunpack.c.h.b16 %v242
      %v382 = vunpack.c.l.b16 %v243
      %v383 = vunpack.c.h.b16 %v243
      %v384 = vunpack.c.l.b16 %v244
      %v385 = vunpack.c.h.b16 %v244
      %v386 = vunpack.c.l.b16 %v245
      %v387 = vunpack.c.h.b16 %v245
      %v388 = vunpack.c.l.b16 %v246
      %v389 = vunpack.c.h.b16 %v246
      %v390 = vunpack.c.l.b16 %v247
      %v391 = vunpack.c.h.b16 %v247
      %v392 = vunpack.c.l.b16 %v248
      %v393 = vunpack.c.h.b16 %v248
      %v394 = vunpack.c.l.b16 %v249
      %v395 = vunpack.c.h.b16 %v249
      %v396 = vunpack.c.l.b16 %v250
      %v397 = vunpack.c.h.b16 %v250
      %v398 = vunpack.c.l.b16 %v251
      %v399 = vunpack.c.h.b16 %v251
      %v400 = vunpack.c.l.b16 %v252
      %v401 = vunpack.c.h.b16 %v252
      %v402 = vpack.c.b16 %v364, %v362
      %v403 = vpack.c.b16 %v365, %v363
      %v404 = vpack.c.b16 %v368, %v366
      %v405 = vpack.c.b16 %v369, %v367
      %v406 = vpack.c.b16 %v372, %v370
      %v407 = vpack.c.b16 %v373, %v371
      %v408 = vpack.c.b16 %v376, %v374
      %v409 = vpack.c.b16 %v377, %v375
      %v410 = vpack.c.b16 %v380, %v378
      %v411 = vpack.c.b16 %v381, %v379
      %v412 = vpack.c.b16 %v384, %v382
      %v413 = vpack.c.b16 %v385, %v383
      %v414 = vpack.c.b16 %v388, %v386
      %v415 = vpack.c.b16 %v389, %v387
      %v416 = vpack.c.b16 %v392, %v390
      %v417 = vpack.c.b16 %v393, %v391
      %v418 = vpack.c.b16 %v396, %v394
      %v419 = vpack.c.b16 %v397, %v395
      %v420 = vpack.c.b16 %v400, %v398
      %v421 = vpack.c.b16 %v401, %v399
      %v506 = vunpack.c.l.b16 %v257
      %v507 = vunpack.c.h.b16 %v257
      %v508 = vunpack.c.l.b16 %v258
      %v509 = vunpack.c.h.b16 %v258
      %v510 = vunpack.c.l.b16 %v259
      %v511 = vunpack.c.h.b16 %v259
      %v512 = vunpack.c.l.b16 %v260
      %v513 = vunpack.c.h.b16 %v260
      %v514 = vunpack.c.l.b16 %v261
      %v515 = vunpack.c.h.b16 %v261
      %v516 = vunpack.c.l.b16 %v262
      %v517 = vunpack.c.h.b16 %v262
      %v518 = vunpack.c.l.b16 %v263
      %v519 = vunpack.c.h.b16 %v263
      %v520 = vunpack.c.l.b16 %v264
      %v521 = vunpack.c.h.b16 %v264
      %v522 = vunpack.c.l.b16 %v265
      %v523 = vunpack.c.h.b16 %v265
      %v524 = vunpack.c.l.b16 %v266
      %v525 = vunpack.c.h.b16 %v266
      %v526 = vunpack.c.l.b16 %v267
      %v527 = vunpack.c.h.b16 %v267
      %v528 = vunpack.c.l.b16 %v268
      %v529 = vunpack.c.h.b16 %v268
      %v530 = vunpack.c.l.b16 %v269
      %v531 = vunpack.c.h.b16 %v269
      %v532 = vunpack.c.l.b16 %v270
      %v533 = vunpack.c.h.b16 %v270
      %v534 = vunpack.c.l.b16 %v271
      %v535 = vunpack.c.h.b16 %v271
      %v536 = vunpack.c.l.b16 %v272
      %v537 = vunpack.c.h.b16 %v272
      %v538 = vunpack.c.l.b16 %v273
      %v539 = vunpack.c.h.b16 %v273
      %v540 = vunpack.c.l.b16 %v274
      %v541 = vunpack.c.h.b16 %v274
      %v542 = vunpack.c.l.b16 %v275
      %v543 = vunpack.c.h.b16 %v275
      %v544 = vunpack.c.l.b16 %v276
      %v545 = vunpack.c.h.b16 %v276
      %v546 = vunpack.c.l.b16 %v277
      %v547 = vunpack.c.h.b16 %v277
      %v548 = vunpack.c.l.b16 %v278
      %v549 = vunpack.c.h.b16 %v278
      %v550 = vunpack.c.l.b16 %v279
      %v551 = vunpack.c.h.b16 %v279
      %v552 = vunpack.c.l.b16 %v280
      %v553 = vunpack.c.h.b16 %v280
      %v554 = vunpack.c.l.b16 %v281
      %v555 = vunpack.c.h.b16 %v281
      %v556 = vunpack.c.l.b16 %v282
      %v557 = vunpack.c.h.b16 %v282
      %v558 = vunpack.c.l.b16 %v283
      %v559 = vunpack.c.h.b16 %v283
      %v560 = vunpack.c.l.b16 %v284
      %v561 = vunpack.c.h.b16 %v284
      %v562 = vunpack.c.l.b16 %v285
      %v563 = vunpack.c.h.b16 %v285
      %v564 = vunpack.c.l.b16 %v286
      %v565 = vunpack.c.h.b16 %v286
      %v566 = vunpack.c.l.b16 %v287
      %v567 = vunpack.c.h.b16 %v287
      %v568 = vunpack.c.l.b16 %v288
      %v569 = vunpack.c.h.b16 %v288
      %v570 = vunpack.c.l.b16 %v289
      %v571 = vunpack.c.h.b16 %v289
      %v572 = vunpack.c.l.b16 %v290
      %v573 = vunpack.c.h.b16 %v290
      %v574 = vunpack.c.l.b16 %v291
      %v575 = vunpack.c.h.b16 %v291
      %v576 = vunpack.c.l.b16 %v292
      %v577 = vunpack.c.h.b16 %v292
      %v578 = vunpack.c.l.b16 %v293
      %v579 = vunpack.c.h.b16 %v293
      %v580 = vunpack.c.l.b16 %v294
      %v581 = vunpack.c.h.b16 %v294
      %v582 = vunpack.c.l.b16 %v295
      %v583 = vunpack.c.h.b16 %v295
      %v584 = vunpack.c.l.b16 %v296
      %v585 = vunpack.c.h.b16 %v296
      %v586 = vunpack.c.l.b16 %v297
      %v587 = vunpack.c.h.b16 %v297
      %v588 = vunpack.c.l.b16 %v298
      %v589 = vunpack.c.h.b16 %v298
      %v590 = vunpack.c.l.b16 %v299
      %v591 = vunpack.c.h.b16 %v299
      %v592 = vunpack.c.l.b16 %v300
      %v593 = vunpack.c.h.b16 %v300
      %v594 = vunpack.c.l.b16 %v301
      %v595 = vunpack.c.h.b16 %v301
      %v596 = vunpack.c.l.b16 %v302
      %v597 = vunpack.c.h.b16 %v302
      %v598 = vunpack.c.l.b16 %v303
      %v599 = vunpack.c.h.b16 %v303
      %v600 = vunpack.c.l.b16 %v304
      %v601 = vunpack.c.h.b16 %v304
      %v602 = vunpack.c.l.b16 %v305
      %v603 = vunpack.c.h.b16 %v305
      %v604 = vunpack.c.l.b16 %v306
      %v605 = vunpack.c.h.b16 %v306
      %v606 = vunpack.c.l.b16 %v307
      %v607 = vunpack.c.h.b16 %v307
      %v608 = vunpack.c.l.b16 %v308
      %v609 = vunpack.c.h.b16 %v308
      %v610 = vunpack.c.l.b16 %v309
      %v611 = vunpack.c.h.b16 %v309
      %v612 = vunpack.c.l.b16 %v310
      %v613 = vunpack.c.h.b16 %v310
      %v614 = vunpack.c.l.b16 %v311
      %v615 = vunpack.c.h.b16 %v311
      %v616 = vunpack.c.l.b16 %v312
      %v617 = vunpack.c.h.b16 %v312
      %v618 = vunpack.c.l.b16 %v313
      %v619 = vunpack.c.h.b16 %v313
      %v620 = vunpack.c.l.b16 %v314
      %v621 = vunpack.c.h.b16 %v314
      %v622 = vunpack.c.l.b16 %v315
      %v623 = vunpack.c.h.b16 %v315
      %v624 = vunpack.c.l.b16 %v316
      %v625 = vunpack.c.h.b16 %v316
      %v626 = vunpack.c.l.b16 %v317
      %v627 = vunpack.c.h.b16 %v317
      %v628 = vunpack.c.l.b16 %v318
      %v629 = vunpack.c.h.b16 %v318
      %v630 = vunpack.c.l.b16 %v319
      %v631 = vunpack.c.h.b16 %v319
      %v632 = vunpack.c.l.b16 %v320
      %v633 = vunpack.c.h.b16 %v320
      %v634 = vpack.c.b16 %v510, %v506
      %v635 = vpack.c.b16 %v511, %v507
      %v636 = vpack.c.b16 %v512, %v508
      %v637 = vpack.c.b16 %v513, %v509
      %v638 = vpack.c.b16 %v518, %v514
      %v639 = vpack.c.b16 %v519, %v515
      %v640 = vpack.c.b16 %v520, %v516
      %v641 = vpack.c.b16 %v521, %v517
      %v642 = vpack.c.b16 %v526, %v522
      %v643 = vpack.c.b16 %v527, %v523
      %v644 = vpack.c.b16 %v528, %v524
      %v645 = vpack.c.b16 %v529, %v525
      %v646 = vpack.c.b16 %v534, %v530
      %v647 = vpack.c.b16 %v535, %v531
      %v648 = vpack.c.b16 %v536, %v532
      %v649 = vpack.c.b16 %v537, %v533
      %v650 = vpack.c.b16 %v542, %v538
      %v651 = vpack.c.b16 %v543, %v539
      %v652 = vpack.c.b16 %v544, %v540
      %v653 = vpack.c.b16 %v545, %v541
      %v654 = vpack.c.b16 %v550, %v546
      %v655 = vpack.c.b16 %v551, %v547
      %v656 = vpack.c.b16 %v552, %v548
      %v657 = vpack.c.b16 %v553, %v549
      %v658 = vpack.c.b16 %v558, %v554
      %v659 = vpack.c.b16 %v559, %v555
      %v660 = vpack.c.b16 %v560, %v556
      %v661 = vpack.c.b16 %v561, %v557
      %v662 = vpack.c.b16 %v566, %v562
      %v663 = vpack.c.b16 %v567, %v563
      %v664 = vpack.c.b16 %v568, %v564
      %v665 = vpack.c.b16 %v569, %v565
      %v666 = vpack.c.b16 %v574, %v570
      %v667 = vpack.c.b16 %v575, %v571
      %v668 = vpack.c.b16 %v576, %v572
      %v669 = vpack.c.b16 %v577, %v573
      %v670 = vpack.c.b16 %v582, %v578
      %v671 = vpack.c.b16 %v583, %v579
      %v672 = vpack.c.b16 %v584, %v580
      %v673 = vpack.c.b16 %v585, %v581
      %v674 = vpack.c.b16 %v590, %v586
      %v675 = vpack.c.b16 %v591, %v587
      %v676 = vpack.c.b16 %v592, %v588
      %v677 = vpack.c.b16 %v593, %v589
      %v678 = vpack.c.b16 %v598, %v594
      %v679 = vpack.c.b16 %v599, %v595
      %v680 = vpack.c.b16 %v600, %v596
      %v681 = vpack.c.b16 %v601, %v597
      %v682 = vpack.c.b16 %v606, %v602
      %v683 = vpack.c.b16 %v607, %v603
      %v684 = vpack.c.b16 %v608, %v604
      %v685 = vpack.c.b16 %v609, %v605
      %v686 = vpack.c.b16 %v614, %v610
      %v687 = vpack.c.b16 %v615, %v611
      %v688 = vpack.c.b16 %v616, %v612
      %v689 = vpack.c.b16 %v617, %v613
      %v690 = vpack.c.b16 %v622, %v618
      %v691 = vpack.c.b16 %v623, %v619
      %v692 = vpack.c.b16 %v624, %v620
      %v693 = vpack.c.b16 %v625, %v621
      %v694 = vpack.c.b16 %v630, %v626
      %v695 = vpack.c.b16 %v631, %v627
      %v696 = vpack.c.b16 %v632, %v628
      %v697 = vpack.c.b16 %v633, %v629
      %762 = vmatprep.subr.bf16.mxu0 %v663
      %763 = vmatpush1.bf16.msra.mxu0 %v662
      %764 = vmatprep.subr.bf16.mxu0 %v659
      %765 = vmatpush1.bf16.msra.mxu0 %v658
      %766 = vmatprep.subr.bf16.mxu0 %v655
      %767 = vmatpush1.bf16.msra.mxu0 %v654
      %768 = vmatprep.subr.bf16.mxu0 %v651
      %769 = vmatpush1.bf16.msra.mxu0 %v650
      %770 = vmatprep.subr.bf16.mxu0 %v647
      %771 = vmatpush1.bf16.msra.mxu0 %v646
      %772 = vmatprep.subr.bf16.mxu0 %v643
      %773 = vmatpush1.bf16.msra.mxu0 %v642
      %774 = vmatprep.subr.bf16.mxu0 %v639
      %775 = vmatpush1.bf16.msra.mxu0 %v638
      %776 = vmatprep.subr.bf16.mxu0 %v635
      %777 = vmatpush1.bf16.msra.mxu0 %v634
      %778 = vmatprep.subr.bf16.mxu0 %v695
      %779 = vmatpush2.bf16.msra.mxu0 %v694
      %780 = vmatprep.subr.bf16.mxu0 %v691
      %781 = vmatpush2.bf16.msra.mxu0 %v690
      %782 = vmatprep.subr.bf16.mxu0 %v687
      %783 = vmatpush2.bf16.msra.mxu0 %v686
      %784 = vmatprep.subr.bf16.mxu0 %v683
      %785 = vmatpush2.bf16.msra.mxu0 %v682
      %786 = vmatprep.subr.bf16.mxu0 %v679
      %787 = vmatpush2.bf16.msra.mxu0 %v678
      %788 = vmatprep.subr.bf16.mxu0 %v675
      %789 = vmatpush2.bf16.msra.mxu0 %v674
      %790 = vmatprep.subr.bf16.mxu0 %v671
      %791 = vmatpush2.bf16.msra.mxu0 %v670
      %792 = vmatprep.subr.bf16.mxu0 %v667
      %793 = vmatpush2.bf16.msra.mxu0 %v666
      %794 = vmatprep.mubr.bf16.mxu0 %v403
      %795 = vmatmul.mubr.bf16.gmra.mxu0 %v402
      %v796 = vpop.f32.mrf.mxu0
      %v797 = vadd.f32 %v325, %v796
      %v798 = vpop.f32.mrf.mxu0
      %v799 = vadd.f32 %v329, %v798
      %v800 = vpop.f32.mrf.mxu0
      %v801 = vadd.f32 %v325, %v800
      %v802 = vpop.f32.mrf.mxu0
      %v803 = vadd.f32 %v329, %v802
      %804 = vmatprep.mubr.bf16.mxu0 %v405
      %805 = vmatmul.mubr.bf16.gmra.mxu0 %v404
      %v806 = vpop.f32.mrf.mxu0
      %v807 = vadd.f32 %v325, %v806
      %v808 = vpop.f32.mrf.mxu0
      %v809 = vadd.f32 %v329, %v808
      %v810 = vpop.f32.mrf.mxu0
      %v811 = vadd.f32 %v325, %v810
      %v812 = vpop.f32.mrf.mxu0
      %v813 = vadd.f32 %v329, %v812
      %814 = vmatprep.mubr.bf16.mxu0 %v407
      %815 = vmatmul.mubr.bf16.gmra.mxu0 %v406
      %v816 = vpop.f32.mrf.mxu0
      %v817 = vadd.f32 %v325, %v816
      %v818 = vpop.f32.mrf.mxu0
      %v819 = vadd.f32 %v329, %v818
      %v820 = vpop.f32.mrf.mxu0
      %v821 = vadd.f32 %v325, %v820
      %v822 = vpop.f32.mrf.mxu0
      %v823 = vadd.f32 %v329, %v822
      %824 = vmatprep.mubr.bf16.mxu0 %v409
      %825 = vmatmul.mubr.bf16.gmra.mxu0 %v408
      %v826 = vpop.f32.mrf.mxu0
      %v827 = vadd.f32 %v325, %v826
      %v828 = vpop.f32.mrf.mxu0
      %v829 = vadd.f32 %v329, %v828
      %v830 = vpop.f32.mrf.mxu0
      %v831 = vadd.f32 %v325, %v830
      %v832 = vpop.f32.mrf.mxu0
      %v833 = vadd.f32 %v329, %v832
      %834 = vmatprep.mubr.bf16.mxu0 %v411
      %835 = vmatmul.mubr.bf16.gmra.mxu0 %v410
      %v836 = vpop.f32.mrf.mxu0
      %v837 = vadd.f32 %v325, %v836
      %v838 = vpop.f32.mrf.mxu0
      %v839 = vadd.f32 %v329, %v838
      %v840 = vpop.f32.mrf.mxu0
      %v841 = vadd.f32 %v325, %v840
      %v842 = vpop.f32.mrf.mxu0
      %v843 = vadd.f32 %v329, %v842
      %844 = vmatprep.mubr.bf16.mxu0 %v413
      %845 = vmatmul.mubr.bf16.gmra.mxu0 %v412
      %v846 = vpop.f32.mrf.mxu0
      %v847 = vadd.f32 %v325, %v846
      %v848 = vpop.f32.mrf.mxu0
      %v849 = vadd.f32 %v329, %v848
      %v850 = vpop.f32.mrf.mxu0
      %v851 = vadd.f32 %v325, %v850
      %v852 = vpop.f32.mrf.mxu0
      %v853 = vadd.f32 %v329, %v852
      %854 = vmatprep.mubr.bf16.mxu0 %v415
      %855 = vmatmul.mubr.bf16.gmra.mxu0 %v414
      %v856 = vpop.f32.mrf.mxu0
      %v857 = vadd.f32 %v325, %v856
      %v858 = vpop.f32.mrf.mxu0
      %v859 = vadd.f32 %v329, %v858
      %v860 = vpop.f32.mrf.mxu0
      %v861 = vadd.f32 %v325, %v860
      %v862 = vpop.f32.mrf.mxu0
      %v863 = vadd.f32 %v329, %v862
      %864 = vmatprep.mubr.bf16.mxu0 %v417
      %865 = vmatmul.mubr.bf16.gmra.mxu0 %v416
      %v866 = vpop.f32.mrf.mxu0
      %v867 = vadd.f32 %v325, %v866
      %v868 = vpop.f32.mrf.mxu0
      %v869 = vadd.f32 %v329, %v868
      %v870 = vpop.f32.mrf.mxu0
      %v871 = vadd.f32 %v325, %v870
      %v872 = vpop.f32.mrf.mxu0
      %v873 = vadd.f32 %v329, %v872
      %874 = vmatprep.mubr.bf16.mxu0 %v419
      %875 = vmatmul.mubr.bf16.gmra.mxu0 %v418
      %v876 = vpop.f32.mrf.mxu0
      %v877 = vadd.f32 %v325, %v876
      %v878 = vpop.f32.mrf.mxu0
      %v879 = vadd.f32 %v329, %v878
      %v880 = vpop.f32.mrf.mxu0
      %v881 = vadd.f32 %v325, %v880
      %v882 = vpop.f32.mrf.mxu0
      %v883 = vadd.f32 %v329, %v882
      %884 = vmatprep.mubr.bf16.mxu0 %v421
      %885 = vmatmul.mubr.bf16.gmra.mxu0 %v420
      %v886 = vpop.f32.mrf.mxu0
      %v887 = vadd.f32 %v325, %v886
      %v888 = vpop.f32.mrf.mxu0
      %v889 = vadd.f32 %v329, %v888
      %v890 = vpop.f32.mrf.mxu0
      %v891 = vadd.f32 %v325, %v890
      %v892 = vpop.f32.mrf.mxu0
      %v893 = vadd.f32 %v329, %v892
      %894 = vdwg.mxu0
      %895 = vmatprep.subr.bf16.mxu0 %v665
      %896 = vmatpush1.bf16.msra.mxu0 %v664
      %897 = vmatprep.subr.bf16.mxu0 %v661
      %898 = vmatpush1.bf16.msra.mxu0 %v660
      %899 = vmatprep.subr.bf16.mxu0 %v657
      %900 = vmatpush1.bf16.msra.mxu0 %v656
      %901 = vmatprep.subr.bf16.mxu0 %v653
      %902 = vmatpush1.bf16.msra.mxu0 %v652
      %903 = vmatprep.subr.bf16.mxu0 %v649
      %904 = vmatpush1.bf16.msra.mxu0 %v648
      %905 = vmatprep.subr.bf16.mxu0 %v645
      %906 = vmatpush1.bf16.msra.mxu0 %v644
      %907 = vmatprep.subr.bf16.mxu0 %v641
      %908 = vmatpush1.bf16.msra.mxu0 %v640
      %909 = vmatprep.subr.bf16.mxu0 %v637
      %910 = vmatpush1.bf16.msra.mxu0 %v636
      %911 = vmatprep.subr.bf16.mxu0 %v697
      %912 = vmatpush2.bf16.msra.mxu0 %v696
      %913 = vmatprep.subr.bf16.mxu0 %v693
      %914 = vmatpush2.bf16.msra.mxu0 %v692
      %915 = vmatprep.subr.bf16.mxu0 %v689
      %916 = vmatpush2.bf16.msra.mxu0 %v688
      %917 = vmatprep.subr.bf16.mxu0 %v685
      %918 = vmatpush2.bf16.msra.mxu0 %v684
      %919 = vmatprep.subr.bf16.mxu0 %v681
      %920 = vmatpush2.bf16.msra.mxu0 %v680
      %921 = vmatprep.subr.bf16.mxu0 %v677
      %922 = vmatpush2.bf16.msra.mxu0 %v676
      %923 = vmatprep.subr.bf16.mxu0 %v673
      %924 = vmatpush2.bf16.msra.mxu0 %v672
      %925 = vmatprep.subr.bf16.mxu0 %v669
      %926 = vmatpush2.bf16.msra.mxu0 %v668
      %927 = vmatprep.mubr.bf16.mxu0 %v403
      %928 = vmatmul.mubr.bf16.gmra.mxu0 %v402
      %v929 = vpop.f32.mrf.mxu0
      %v930 = vadd.f32 %v333, %v929
      %v931 = vpop.f32.mrf.mxu0
      %v932 = vadd.f32 %v337, %v931
      %v933 = vpop.f32.mrf.mxu0
      %v934 = vadd.f32 %v333, %v933
      %v935 = vpop.f32.mrf.mxu0
      %v936 = vadd.f32 %v337, %v935
      %937 = vmatprep.mubr.bf16.mxu0 %v405
      %938 = vmatmul.mubr.bf16.gmra.mxu0 %v404
      %v939 = vpop.f32.mrf.mxu0
      %v940 = vadd.f32 %v333, %v939
      %v941 = vpop.f32.mrf.mxu0
      %v942 = vadd.f32 %v337, %v941
      %v943 = vpop.f32.mrf.mxu0
      %v944 = vadd.f32 %v333, %v943
      %v945 = vpop.f32.mrf.mxu0
      %v946 = vadd.f32 %v337, %v945
      %947 = vmatprep.mubr.bf16.mxu0 %v407
      %948 = vmatmul.mubr.bf16.gmra.mxu0 %v406
      %v949 = vpop.f32.mrf.mxu0
      %v950 = vadd.f32 %v333, %v949
      %v951 = vpop.f32.mrf.mxu0
      %v952 = vadd.f32 %v337, %v951
      %v953 = vpop.f32.mrf.mxu0
      %v954 = vadd.f32 %v333, %v953
      %v955 = vpop.f32.mrf.mxu0
      %v956 = vadd.f32 %v337, %v955
      %957 = vmatprep.mubr.bf16.mxu0 %v409
      %958 = vmatmul.mubr.bf16.gmra.mxu0 %v408
      %v959 = vpop.f32.mrf.mxu0
      %v960 = vadd.f32 %v333, %v959
      %v961 = vpop.f32.mrf.mxu0
      %v962 = vadd.f32 %v337, %v961
      %v963 = vpop.f32.mrf.mxu0
      %v964 = vadd.f32 %v333, %v963
      %v965 = vpop.f32.mrf.mxu0
      %v966 = vadd.f32 %v337, %v965
      %967 = vmatprep.mubr.bf16.mxu0 %v411
      %968 = vmatmul.mubr.bf16.gmra.mxu0 %v410
      %v969 = vpop.f32.mrf.mxu0
      %v970 = vadd.f32 %v333, %v969
      %v971 = vpop.f32.mrf.mxu0
      %v972 = vadd.f32 %v337, %v971
      %v973 = vpop.f32.mrf.mxu0
      %v974 = vadd.f32 %v333, %v973
      %v975 = vpop.f32.mrf.mxu0
      %v976 = vadd.f32 %v337, %v975
      %977 = vmatprep.mubr.bf16.mxu0 %v413
      %978 = vmatmul.mubr.bf16.gmra.mxu0 %v412
      %v979 = vpop.f32.mrf.mxu0
      %v980 = vadd.f32 %v333, %v979
      %v981 = vpop.f32.mrf.mxu0
      %v982 = vadd.f32 %v337, %v981
      %v983 = vpop.f32.mrf.mxu0
      %v984 = vadd.f32 %v333, %v983
      %v985 = vpop.f32.mrf.mxu0
      %v986 = vadd.f32 %v337, %v985
      %987 = vmatprep.mubr.bf16.mxu0 %v415
      %988 = vmatmul.mubr.bf16.gmra.mxu0 %v414
      %v989 = vpop.f32.mrf.mxu0
      %v990 = vadd.f32 %v333, %v989
      %v991 = vpop.f32.mrf.mxu0
      %v992 = vadd.f32 %v337, %v991
      %v993 = vpop.f32.mrf.mxu0
      %v994 = vadd.f32 %v333, %v993
      %v995 = vpop.f32.mrf.mxu0
      %v996 = vadd.f32 %v337, %v995
      %997 = vmatprep.mubr.bf16.mxu0 %v417
      %998 = vmatmul.mubr.bf16.gmra.mxu0 %v416
      %v999 = vpop.f32.mrf.mxu0
      %v1000 = vadd.f32 %v333, %v999
      %v1001 = vpop.f32.mrf.mxu0
      %v1002 = vadd.f32 %v337, %v1001
      %v1003 = vpop.f32.mrf.mxu0
      %v1004 = vadd.f32 %v333, %v1003
      %v1005 = vpop.f32.mrf.mxu0
      %v1006 = vadd.f32 %v337, %v1005
      %1007 = vmatprep.mubr.bf16.mxu0 %v419
      %1008 = vmatmul.mubr.bf16.gmra.mxu0 %v418
      %v1009 = vpop.f32.mrf.mxu0
      %v1010 = vadd.f32 %v333, %v1009
      %v1011 = vpop.f32.mrf.mxu0
      %v1012 = vadd.f32 %v337, %v1011
      %v1013 = vpop.f32.mrf.mxu0
      %v1014 = vadd.f32 %v333, %v1013
      %v1015 = vpop.f32.mrf.mxu0
      %v1016 = vadd.f32 %v337, %v1015
      %1017 = vmatprep.mubr.bf16.mxu0 %v421
      %1018 = vmatmul.mubr.bf16.gmra.mxu0 %v420
      %v1019 = vpop.f32.mrf.mxu0
      %v1020 = vadd.f32 %v333, %v1019
      %v1021 = vpop.f32.mrf.mxu0
      %v1022 = vadd.f32 %v337, %v1021
      %v1023 = vpop.f32.mrf.mxu0
      %v1024 = vadd.f32 %v333, %v1023
      %v1025 = vpop.f32.mrf.mxu0
      %v1026 = vadd.f32 %v337, %v1025
      %1027 = vdwg.mxu0
      %v1028 = vmax.f32 %v797, 0.0
      %v1029 = vmax.f32 %v799, 0.0
      %v1030 = vmax.f32 %v930, 0.0
      %v1031 = vmax.f32 %v932, 0.0
      %v1032 = vmax.f32 %v801, 0.0
      %v1033 = vmax.f32 %v803, 0.0
      %v1034 = vmax.f32 %v934, 0.0
      %v1035 = vmax.f32 %v936, 0.0
      %v1036 = vmax.f32 %v807, 0.0
      %v1037 = vmax.f32 %v809, 0.0
      %v1038 = vmax.f32 %v940, 0.0
      %v1039 = vmax.f32 %v942, 0.0
      %v1040 = vmax.f32 %v811, 0.0
      %v1041 = vmax.f32 %v813, 0.0
      %v1042 = vmax.f32 %v944, 0.0
      %v1043 = vmax.f32 %v946, 0.0
      %v1044 = vmax.f32 %v817, 0.0
      %v1045 = vmax.f32 %v819, 0.0
      %v1046 = vmax.f32 %v950, 0.0
      %v1047 = vmax.f32 %v952, 0.0
      %v1048 = vmax.f32 %v821, 0.0
      %v1049 = vmax.f32 %v823, 0.0
      %v1050 = vmax.f32 %v954, 0.0
      %v1051 = vmax.f32 %v956, 0.0
      %v1052 = vmax.f32 %v827, 0.0
      %v1053 = vmax.f32 %v829, 0.0
      %v1054 = vmax.f32 %v960, 0.0
      %v1055 = vmax.f32 %v962, 0.0
      %v1056 = vmax.f32 %v831, 0.0
      %v1057 = vmax.f32 %v833, 0.0
      %v1058 = vmax.f32 %v964, 0.0
      %v1059 = vmax.f32 %v966, 0.0
      %v1060 = vmax.f32 %v837, 0.0
      %v1061 = vmax.f32 %v839, 0.0
      %v1062 = vmax.f32 %v970, 0.0
      %v1063 = vmax.f32 %v972, 0.0
      %v1064 = vmax.f32 %v841, 0.0
      %v1065 = vmax.f32 %v843, 0.0
      %v1066 = vmax.f32 %v974, 0.0
      %v1067 = vmax.f32 %v976, 0.0
      %v1068 = vmax.f32 %v847, 0.0
      %v1069 = vmax.f32 %v849, 0.0
      %v1070 = vmax.f32 %v980, 0.0
      %v1071 = vmax.f32 %v982, 0.0
      %v1072 = vmax.f32 %v851, 0.0
      %v1073 = vmax.f32 %v853, 0.0
      %v1074 = vmax.f32 %v984, 0.0
      %v1075 = vmax.f32 %v986, 0.0
      %v1076 = vmax.f32 %v857, 0.0
      %v1077 = vmax.f32 %v859, 0.0
      %v1078 = vmax.f32 %v990, 0.0
      %v1079 = vmax.f32 %v992, 0.0
      %v1080 = vmax.f32 %v861, 0.0
      %v1081 = vmax.f32 %v863, 0.0
      %v1082 = vmax.f32 %v994, 0.0
      %v1083 = vmax.f32 %v996, 0.0
      %v1084 = vmax.f32 %v867, 0.0
      %v1085 = vmax.f32 %v869, 0.0
      %v1086 = vmax.f32 %v1000, 0.0
      %v1087 = vmax.f32 %v1002, 0.0
      %v1088 = vmax.f32 %v871, 0.0
      %v1089 = vmax.f32 %v873, 0.0
      %v1090 = vmax.f32 %v1004, 0.0
      %v1091 = vmax.f32 %v1006, 0.0
      %v1092 = vmax.f32 %v877, 0.0
      %v1093 = vmax.f32 %v879, 0.0
      %v1094 = vmax.f32 %v1010, 0.0
      %v1095 = vmax.f32 %v1012, 0.0
      %v1096 = vmax.f32 %v881, 0.0
      %v1097 = vmax.f32 %v883, 0.0
      %v1098 = vmax.f32 %v1014, 0.0
      %v1099 = vmax.f32 %v1016, 0.0
      %v1100 = vmax.f32 %v887, 0.0
      %v1101 = vmax.f32 %v889, 0.0
      %v1102 = vmax.f32 %v1020, 0.0
      %v1103 = vmax.f32 %v1022, 0.0
      %v1104 = vmax.f32 %v891, 0.0
      %v1105 = vmax.f32 %v893, 0.0
      %v1106 = vmax.f32 %v1024, 0.0
      %v1107 = vmax.f32 %v1026, 0.0
      %v1108 = vpack.c.bf16 %v1032, %v1028
      %v1109 = vpack.c.bf16 %v1033, %v1029
      %v1110 = vpack.c.bf16 %v1034, %v1030
      %v1111 = vpack.c.bf16 %v1035, %v1031
      %v1112 = vpack.c.bf16 %v1040, %v1036
      %v1113 = vpack.c.bf16 %v1041, %v1037
      %v1114 = vpack.c.bf16 %v1042, %v1038
      %v1115 = vpack.c.bf16 %v1043, %v1039
      %v1116 = vpack.c.bf16 %v1048, %v1044
      %v1117 = vpack.c.bf16 %v1049, %v1045
      %v1118 = vpack.c.bf16 %v1050, %v1046
      %v1119 = vpack.c.bf16 %v1051, %v1047
      %v1120 = vpack.c.bf16 %v1056, %v1052
      %v1121 = vpack.c.bf16 %v1057, %v1053
      %v1122 = vpack.c.bf16 %v1058, %v1054
      %v1123 = vpack.c.bf16 %v1059, %v1055
      %v1124 = vpack.c.bf16 %v1064, %v1060
      %v1125 = vpack.c.bf16 %v1065, %v1061
      %v1126 = vpack.c.bf16 %v1066, %v1062
      %v1127 = vpack.c.bf16 %v1067, %v1063
      %v1128 = vpack.c.bf16 %v1072, %v1068
      %v1129 = vpack.c.bf16 %v1073, %v1069
      %v1130 = vpack.c.bf16 %v1074, %v1070
      %v1131 = vpack.c.bf16 %v1075, %v1071
      %v1132 = vpack.c.bf16 %v1080, %v1076
      %v1133 = vpack.c.bf16 %v1081, %v1077
      %v1134 = vpack.c.bf16 %v1082, %v1078
      %v1135 = vpack.c.bf16 %v1083, %v1079
      %v1136 = vpack.c.bf16 %v1088, %v1084
      %v1137 = vpack.c.bf16 %v1089, %v1085
      %v1138 = vpack.c.bf16 %v1090, %v1086
      %v1139 = vpack.c.bf16 %v1091, %v1087
      %v1140 = vpack.c.bf16 %v1096, %v1092
      %v1141 = vpack.c.bf16 %v1097, %v1093
      %v1142 = vpack.c.bf16 %v1098, %v1094
      %v1143 = vpack.c.bf16 %v1099, %v1095
      %v1144 = vpack.c.bf16 %v1104, %v1100
      %v1145 = vpack.c.bf16 %v1105, %v1101
      %v1146 = vpack.c.bf16 %v1106, %v1102
      %v1147 = vpack.c.bf16 %v1107, %v1103
      %v1148 = vld [vmem:[%s2] sm:$0xf]
      %v1149 = vld [vmem:[%s2 + $0x4] sm:$0xf]
      %v1150 = vld [vmem:[%s2 + $0x8] sm:$0xf]
      %v1151 = vld [vmem:[%s2 + $0xc] sm:$0xf]
      %v1152 = vld [vmem:[%s2 + $0x10] sm:$0xf]
      %v1153 = vld [vmem:[%s2 + $0x14] sm:$0xf]
      %v1154 = vld [vmem:[%s2 + $0x18] sm:$0xf]
      %v1155 = vld [vmem:[%s2 + $0x1c] sm:$0xf]
      %v1156 = vld [vmem:[%s2 + $0x20] sm:$0xf]
      %v1157 = vld [vmem:[%s2 + $0x24] sm:$0xf]
      %v1158 = vld [vmem:[%s2 + $0x28] sm:$0xf]
      %v1159 = vld [vmem:[%s2 + $0x2c] sm:$0xf]
      %v1160 = vld [vmem:[%s2 + $0x30] sm:$0xf]
      %v1161 = vld [vmem:[%s2 + $0x34] sm:$0xf]
      %v1162 = vld [vmem:[%s2 + $0x38] sm:$0xf]
      %v1163 = vld [vmem:[%s2 + $0x3c] sm:$0xf]
      %v1164 = vld [vmem:[%s2 + $0x40] sm:$0xf]
      %v1165 = vld [vmem:[%s2 + $0x44] sm:$0xf]
      %v1166 = vld [vmem:[%s2 + $0x48] sm:$0xf]
      %v1167 = vld [vmem:[%s2 + $0x4c] sm:$0xf]
      %v1168 = vld [vmem:[%s2 + $0x50] sm:$0xf]
      %v1169 = vld [vmem:[%s2 + $0x54] sm:$0xf]
      %v1170 = vld [vmem:[%s2 + $0x58] sm:$0xf]
      %v1171 = vld [vmem:[%s2 + $0x5c] sm:$0xf]
      %v1172 = vld [vmem:[%s2 + $0x60] sm:$0xf]
      %v1173 = vld [vmem:[%s2 + $0x64] sm:$0xf]
      %v1174 = vld [vmem:[%s2 + $0x68] sm:$0xf]
      %v1175 = vld [vmem:[%s2 + $0x6c] sm:$0xf]
      %v1176 = vld [vmem:[%s2 + $0x70] sm:$0xf]
      %v1177 = vld [vmem:[%s2 + $0x74] sm:$0xf]
      %v1178 = vld [vmem:[%s2 + $0x78] sm:$0xf]
      %v1179 = vld [vmem:[%s2 + $0x7c] sm:$0xf]
      %v1180 = vld [vmem:[%s2 + $0x80] sm:$0xf]
      %v1181 = vld [vmem:[%s2 + $0x84] sm:$0xf]
      %v1182 = vld [vmem:[%s2 + $0x88] sm:$0xf]
      %v1183 = vld [vmem:[%s2 + $0x8c] sm:$0xf]
      %v1184 = vld [vmem:[%s2 + $0x90] sm:$0xf]
      %v1185 = vld [vmem:[%s2 + $0x94] sm:$0xf]
      %v1186 = vld [vmem:[%s2 + $0x98] sm:$0xf]
      %v1187 = vld [vmem:[%s2 + $0x9c] sm:$0xf]
      %v1188 = vld [vmem:[%s2 + $0xa0] sm:$0xf]
      %v1189 = vld [vmem:[%s2 + $0xa4] sm:$0xf]
      %v1190 = vld [vmem:[%s2 + $0xa8] sm:$0xf]
      %v1191 = vld [vmem:[%s2 + $0xac] sm:$0xf]
      %v1192 = vld [vmem:[%s2 + $0xb0] sm:$0xf]
      %v1193 = vld [vmem:[%s2 + $0xb4] sm:$0xf]
      %v1194 = vld [vmem:[%s2 + $0xb8] sm:$0xf]
      %v1195 = vld [vmem:[%s2 + $0xbc] sm:$0xf]
      %v1196 = vld [vmem:[%s2 + $0xc0] sm:$0xf]
      %v1197 = vld [vmem:[%s2 + $0xc4] sm:$0xf]
      %v1198 = vld [vmem:[%s2 + $0xc8] sm:$0xf]
      %v1199 = vld [vmem:[%s2 + $0xcc] sm:$0xf]
      %v1200 = vld [vmem:[%s2 + $0xd0] sm:$0xf]
      %v1201 = vld [vmem:[%s2 + $0xd4] sm:$0xf]
      %v1202 = vld [vmem:[%s2 + $0xd8] sm:$0xf]
      %v1203 = vld [vmem:[%s2 + $0xdc] sm:$0xf]
      %v1204 = vld [vmem:[%s2 + $0xe0] sm:$0xf]
      %v1205 = vld [vmem:[%s2 + $0xe4] sm:$0xf]
      %v1206 = vld [vmem:[%s2 + $0xe8] sm:$0xf]
      %v1207 = vld [vmem:[%s2 + $0xec] sm:$0xf]
      %v1208 = vld [vmem:[%s2 + $0xf0] sm:$0xf]
      %v1209 = vld [vmem:[%s2 + $0xf4] sm:$0xf]
      %v1210 = vld [vmem:[%s2 + $0xf8] sm:$0xf]
      %v1211 = vld [vmem:[%s2 + $0xfc] sm:$0xf]
      %v1213 = vlaneseq
      %v1214 = vshrl.u32 %v1213, 7
      %v1215 = vsub.s32 0, %v1214
      %v1216 = vrot.slane %v254, %v1215
      %v1282 = vunpack.c.l.b16 %v1148
      %v1283 = vunpack.c.l.b16 %v1149
      %v1284 = vunpack.c.l.b16 %v1150
      %v1285 = vunpack.c.l.b16 %v1151
      %v1286 = vunpack.c.l.b16 %v1152
      %v1287 = vunpack.c.l.b16 %v1153
      %v1288 = vunpack.c.l.b16 %v1154
      %v1289 = vunpack.c.l.b16 %v1155
      %v1290 = vunpack.c.l.b16 %v1156
      %v1291 = vunpack.c.l.b16 %v1157
      %v1292 = vunpack.c.l.b16 %v1158
      %v1293 = vunpack.c.l.b16 %v1159
      %v1294 = vunpack.c.l.b16 %v1160
      %v1295 = vunpack.c.l.b16 %v1161
      %v1296 = vunpack.c.l.b16 %v1162
      %v1297 = vunpack.c.l.b16 %v1163
      %v1298 = vunpack.c.l.b16 %v1164
      %v1299 = vunpack.c.l.b16 %v1165
      %v1300 = vunpack.c.l.b16 %v1166
      %v1301 = vunpack.c.l.b16 %v1167
      %v1302 = vunpack.c.l.b16 %v1168
      %v1303 = vunpack.c.l.b16 %v1169
      %v1304 = vunpack.c.l.b16 %v1170
      %v1305 = vunpack.c.l.b16 %v1171
      %v1306 = vunpack.c.l.b16 %v1172
      %v1307 = vunpack.c.l.b16 %v1173
      %v1308 = vunpack.c.l.b16 %v1174
      %v1309 = vunpack.c.l.b16 %v1175
      %v1310 = vunpack.c.l.b16 %v1176
      %v1311 = vunpack.c.l.b16 %v1177
      %v1312 = vunpack.c.l.b16 %v1178
      %v1313 = vunpack.c.l.b16 %v1179
      %v1314 = vunpack.c.l.b16 %v1180
      %v1315 = vunpack.c.l.b16 %v1181
      %v1316 = vunpack.c.l.b16 %v1182
      %v1317 = vunpack.c.l.b16 %v1183
      %v1318 = vunpack.c.l.b16 %v1184
      %v1319 = vunpack.c.l.b16 %v1185
      %v1320 = vunpack.c.l.b16 %v1186
      %v1321 = vunpack.c.l.b16 %v1187
      %v1322 = vunpack.c.l.b16 %v1188
      %v1323 = vunpack.c.l.b16 %v1189
      %v1324 = vunpack.c.l.b16 %v1190
      %v1325 = vunpack.c.l.b16 %v1191
      %v1326 = vunpack.c.l.b16 %v1192
      %v1327 = vunpack.c.l.b16 %v1193
      %v1328 = vunpack.c.l.b16 %v1194
      %v1329 = vunpack.c.l.b16 %v1195
      %v1330 = vunpack.c.l.b16 %v1196
      %v1331 = vunpack.c.l.b16 %v1197
      %v1332 = vunpack.c.l.b16 %v1198
      %v1333 = vunpack.c.l.b16 %v1199
      %v1334 = vunpack.c.l.b16 %v1200
      %v1335 = vunpack.c.l.b16 %v1201
      %v1336 = vunpack.c.l.b16 %v1202
      %v1337 = vunpack.c.l.b16 %v1203
      %v1338 = vunpack.c.l.b16 %v1204
      %v1339 = vunpack.c.l.b16 %v1205
      %v1340 = vunpack.c.l.b16 %v1206
      %v1341 = vunpack.c.l.b16 %v1207
      %v1342 = vunpack.c.l.b16 %v1208
      %v1343 = vunpack.c.l.b16 %v1209
      %v1344 = vunpack.c.l.b16 %v1210
      %v1345 = vunpack.c.l.b16 %v1211
      %v1346 = vpack.c.b16 %v1283, %v1282
      %v1347 = vpack.c.b16 %v1285, %v1284
      %v1348 = vpack.c.b16 %v1287, %v1286
      %v1349 = vpack.c.b16 %v1289, %v1288
      %v1350 = vpack.c.b16 %v1291, %v1290
      %v1351 = vpack.c.b16 %v1293, %v1292
      %v1352 = vpack.c.b16 %v1295, %v1294
      %v1353 = vpack.c.b16 %v1297, %v1296
      %v1354 = vpack.c.b16 %v1299, %v1298
      %v1355 = vpack.c.b16 %v1301, %v1300
      %v1356 = vpack.c.b16 %v1303, %v1302
      %v1357 = vpack.c.b16 %v1305, %v1304
      %v1358 = vpack.c.b16 %v1307, %v1306
      %v1359 = vpack.c.b16 %v1309, %v1308
      %v1360 = vpack.c.b16 %v1311, %v1310
      %v1361 = vpack.c.b16 %v1313, %v1312
      %v1362 = vpack.c.b16 %v1315, %v1314
      %v1363 = vpack.c.b16 %v1317, %v1316
      %v1364 = vpack.c.b16 %v1319, %v1318
      %v1365 = vpack.c.b16 %v1321, %v1320
      %v1366 = vpack.c.b16 %v1323, %v1322
      %v1367 = vpack.c.b16 %v1325, %v1324
      %v1368 = vpack.c.b16 %v1327, %v1326
      %v1369 = vpack.c.b16 %v1329, %v1328
      %v1370 = vpack.c.b16 %v1331, %v1330
      %v1371 = vpack.c.b16 %v1333, %v1332
      %v1372 = vpack.c.b16 %v1335, %v1334
      %v1373 = vpack.c.b16 %v1337, %v1336
      %v1374 = vpack.c.b16 %v1339, %v1338
      %v1375 = vpack.c.b16 %v1341, %v1340
      %v1376 = vpack.c.b16 %v1343, %v1342
      %v1377 = vpack.c.b16 %v1345, %v1344
      %1410 = vmatprep.subr.bf16.mxu0 0
      %1411 = vmatpush1.bf16.msra.mxu0 %v1353
      %1412 = vmatprep.subr.bf16.mxu0 0
      %1413 = vmatpush1.bf16.msra.mxu0 %v1352
      %1414 = vmatprep.subr.bf16.mxu0 0
      %1415 = vmatpush1.bf16.msra.mxu0 %v1351
      %1416 = vmatprep.subr.bf16.mxu0 0
      %1417 = vmatpush1.bf16.msra.mxu0 %v1350
      %1418 = vmatprep.subr.bf16.mxu0 0
      %1419 = vmatpush1.bf16.msra.mxu0 %v1349
      %1420 = vmatprep.subr.bf16.mxu0 0
      %1421 = vmatpush1.bf16.msra.mxu0 %v1348
      %1422 = vmatprep.subr.bf16.mxu0 0
      %1423 = vmatpush1.bf16.msra.mxu0 %v1347
      %1424 = vmatprep.subr.bf16.mxu0 0
      %1425 = vmatpush1.bf16.msra.mxu0 %v1346
      %1426 = vmatprep.subr.bf16.mxu0 0
      %1427 = vmatpush2.bf16.msra.mxu0 %v1361
      %1428 = vmatprep.subr.bf16.mxu0 0
      %1429 = vmatpush2.bf16.msra.mxu0 %v1360
      %1430 = vmatprep.subr.bf16.mxu0 0
      %1431 = vmatpush2.bf16.msra.mxu0 %v1359
      %1432 = vmatprep.subr.bf16.mxu0 0
      %1433 = vmatpush2.bf16.msra.mxu0 %v1358
      %1434 = vmatprep.subr.bf16.mxu0 0
      %1435 = vmatpush2.bf16.msra.mxu0 %v1357
      %1436 = vmatprep.subr.bf16.mxu0 0
      %1437 = vmatpush2.bf16.msra.mxu0 %v1356
      %1438 = vmatprep.subr.bf16.mxu0 0
      %1439 = vmatpush2.bf16.msra.mxu0 %v1355
      %1440 = vmatprep.subr.bf16.mxu0 0
      %1441 = vmatpush2.bf16.msra.mxu0 %v1354
      %1442 = vmatprep.mubr.bf16.mxu0 %v1109
      %1443 = vmatmul.mubr.bf16.gmra.mxu0 %v1108
      %v1444 = vpop.f32.mrf.mxu0
      %v1445 = vadd.f32 %v1216, %v1444
      %v1446 = vpop.f32.mrf.mxu0
      %v1447 = vpop.f32.mrf.mxu0
      %v1448 = vadd.f32 %v1216, %v1447
      %v1449 = vpop.f32.mrf.mxu0
      %1450 = vmatprep.mubr.bf16.mxu0 %v1113
      %1451 = vmatmul.mubr.bf16.gmra.mxu0 %v1112
      %v1452 = vpop.f32.mrf.mxu0
      %v1453 = vadd.f32 %v1216, %v1452
      %v1454 = vpop.f32.mrf.mxu0
      %v1455 = vpop.f32.mrf.mxu0
      %v1456 = vadd.f32 %v1216, %v1455
      %v1457 = vpop.f32.mrf.mxu0
      %1458 = vmatprep.mubr.bf16.mxu0 %v1117
      %1459 = vmatmul.mubr.bf16.gmra.mxu0 %v1116
      %v1460 = vpop.f32.mrf.mxu0
      %v1461 = vadd.f32 %v1216, %v1460
      %v1462 = vpop.f32.mrf.mxu0
      %v1463 = vpop.f32.mrf.mxu0
      %v1464 = vadd.f32 %v1216, %v1463
      %v1465 = vpop.f32.mrf.mxu0
      %1466 = vmatprep.mubr.bf16.mxu0 %v1121
      %1467 = vmatmul.mubr.bf16.gmra.mxu0 %v1120
      %v1468 = vpop.f32.mrf.mxu0
      %v1469 = vadd.f32 %v1216, %v1468
      %v1470 = vpop.f32.mrf.mxu0
      %v1471 = vpop.f32.mrf.mxu0
      %v1472 = vadd.f32 %v1216, %v1471
      %v1473 = vpop.f32.mrf.mxu0
      %1474 = vmatprep.mubr.bf16.mxu0 %v1125
      %1475 = vmatmul.mubr.bf16.gmra.mxu0 %v1124
      %v1476 = vpop.f32.mrf.mxu0
      %v1477 = vadd.f32 %v1216, %v1476
      %v1478 = vpop.f32.mrf.mxu0
      %v1479 = vpop.f32.mrf.mxu0
      %v1480 = vadd.f32 %v1216, %v1479
      %v1481 = vpop.f32.mrf.mxu0
      %1482 = vmatprep.mubr.bf16.mxu0 %v1129
      %1483 = vmatmul.mubr.bf16.gmra.mxu0 %v1128
      %v1484 = vpop.f32.mrf.mxu0
      %v1485 = vadd.f32 %v1216, %v1484
      %v1486 = vpop.f32.mrf.mxu0
      %v1487 = vpop.f32.mrf.mxu0
      %v1488 = vadd.f32 %v1216, %v1487
      %v1489 = vpop.f32.mrf.mxu0
      %1490 = vmatprep.mubr.bf16.mxu0 %v1133
      %1491 = vmatmul.mubr.bf16.gmra.mxu0 %v1132
      %v1492 = vpop.f32.mrf.mxu0
      %v1493 = vadd.f32 %v1216, %v1492
      %v1494 = vpop.f32.mrf.mxu0
      %v1495 = vpop.f32.mrf.mxu0
      %v1496 = vadd.f32 %v1216, %v1495
      %v1497 = vpop.f32.mrf.mxu0
      %1498 = vmatprep.mubr.bf16.mxu0 %v1137
      %1499 = vmatmul.mubr.bf16.gmra.mxu0 %v1136
      %v1500 = vpop.f32.mrf.mxu0
      %v1501 = vadd.f32 %v1216, %v1500
      %v1502 = vpop.f32.mrf.mxu0
      %v1503 = vpop.f32.mrf.mxu0
      %v1504 = vadd.f32 %v1216, %v1503
      %v1505 = vpop.f32.mrf.mxu0
      %1506 = vmatprep.mubr.bf16.mxu0 %v1141
      %1507 = vmatmul.mubr.bf16.gmra.mxu0 %v1140
      %v1508 = vpop.f32.mrf.mxu0
      %v1509 = vadd.f32 %v1216, %v1508
      %v1510 = vpop.f32.mrf.mxu0
      %v1511 = vpop.f32.mrf.mxu0
      %v1512 = vadd.f32 %v1216, %v1511
      %v1513 = vpop.f32.mrf.mxu0
      %1514 = vmatprep.mubr.bf16.mxu0 %v1145
      %1515 = vmatmul.mubr.bf16.gmra.mxu0 %v1144
      %v1516 = vpop.f32.mrf.mxu0
      %v1517 = vadd.f32 %v1216, %v1516
      %v1518 = vpop.f32.mrf.mxu0
      %v1519 = vpop.f32.mrf.mxu0
      %v1520 = vadd.f32 %v1216, %v1519
      %v1521 = vpop.f32.mrf.mxu0
      %1522 = vdwg.mxu0
      %1523 = vmatprep.subr.bf16.mxu0 0
      %1524 = vmatpush1.bf16.msra.mxu0 %v1369
      %1525 = vmatprep.subr.bf16.mxu0 0
      %1526 = vmatpush1.bf16.msra.mxu0 %v1368
      %1527 = vmatprep.subr.bf16.mxu0 0
      %1528 = vmatpush1.bf16.msra.mxu0 %v1367
      %1529 = vmatprep.subr.bf16.mxu0 0
      %1530 = vmatpush1.bf16.msra.mxu0 %v1366
      %1531 = vmatprep.subr.bf16.mxu0 0
      %1532 = vmatpush1.bf16.msra.mxu0 %v1365
      %1533 = vmatprep.subr.bf16.mxu0 0
      %1534 = vmatpush1.bf16.msra.mxu0 %v1364
      %1535 = vmatprep.subr.bf16.mxu0 0
      %1536 = vmatpush1.bf16.msra.mxu0 %v1363
      %1537 = vmatprep.subr.bf16.mxu0 0
      %1538 = vmatpush1.bf16.msra.mxu0 %v1362
      %1539 = vmatprep.subr.bf16.mxu0 0
      %1540 = vmatpush2.bf16.msra.mxu0 %v1377
      %1541 = vmatprep.subr.bf16.mxu0 0
      %1542 = vmatpush2.bf16.msra.mxu0 %v1376
      %1543 = vmatprep.subr.bf16.mxu0 0
      %1544 = vmatpush2.bf16.msra.mxu0 %v1375
      %1545 = vmatprep.subr.bf16.mxu0 0
      %1546 = vmatpush2.bf16.msra.mxu0 %v1374
      %1547 = vmatprep.subr.bf16.mxu0 0
      %1548 = vmatpush2.bf16.msra.mxu0 %v1373
      %1549 = vmatprep.subr.bf16.mxu0 0
      %1550 = vmatpush2.bf16.msra.mxu0 %v1372
      %1551 = vmatprep.subr.bf16.mxu0 0
      %1552 = vmatpush2.bf16.msra.mxu0 %v1371
      %1553 = vmatprep.subr.bf16.mxu0 0
      %1554 = vmatpush2.bf16.msra.mxu0 %v1370
      %1555 = vmatprep.mubr.bf16.mxu0 %v1111
      %1556 = vmatmul.mubr.bf16.gmra.mxu0 %v1110
      %v1557 = vpop.f32.mrf.mxu0
      %v1558 = vadd.f32 %v1445, %v1557
      %v1559 = vpop.f32.mrf.mxu0
      %v1560 = vpop.f32.mrf.mxu0
      %v1561 = vadd.f32 %v1448, %v1560
      %v1562 = vpop.f32.mrf.mxu0
      %1563 = vmatprep.mubr.bf16.mxu0 %v1115
      %1564 = vmatmul.mubr.bf16.gmra.mxu0 %v1114
      %v1565 = vpop.f32.mrf.mxu0
      %v1566 = vadd.f32 %v1453, %v1565
      %v1567 = vpop.f32.mrf.mxu0
      %v1568 = vpop.f32.mrf.mxu0
      %v1569 = vadd.f32 %v1456, %v1568
      %v1570 = vpop.f32.mrf.mxu0
      %1571 = vmatprep.mubr.bf16.mxu0 %v1119
      %1572 = vmatmul.mubr.bf16.gmra.mxu0 %v1118
      %v1573 = vpop.f32.mrf.mxu0
      %v1574 = vadd.f32 %v1461, %v1573
      %v1575 = vpop.f32.mrf.mxu0
      %v1576 = vpop.f32.mrf.mxu0
      %v1577 = vadd.f32 %v1464, %v1576
      %v1578 = vpop.f32.mrf.mxu0
      %1579 = vmatprep.mubr.bf16.mxu0 %v1123
      %1580 = vmatmul.mubr.bf16.gmra.mxu0 %v1122
      %v1581 = vpop.f32.mrf.mxu0
      %v1582 = vadd.f32 %v1469, %v1581
      %v1583 = vpop.f32.mrf.mxu0
      %v1584 = vpop.f32.mrf.mxu0
      %v1585 = vadd.f32 %v1472, %v1584
      %v1586 = vpop.f32.mrf.mxu0
      %1587 = vmatprep.mubr.bf16.mxu0 %v1127
      %1588 = vmatmul.mubr.bf16.gmra.mxu0 %v1126
      %v1589 = vpop.f32.mrf.mxu0
      %v1590 = vadd.f32 %v1477, %v1589
      %v1591 = vpop.f32.mrf.mxu0
      %v1592 = vpop.f32.mrf.mxu0
      %v1593 = vadd.f32 %v1480, %v1592
      %v1594 = vpop.f32.mrf.mxu0
      %1595 = vmatprep.mubr.bf16.mxu0 %v1131
      %1596 = vmatmul.mubr.bf16.gmra.mxu0 %v1130
      %v1597 = vpop.f32.mrf.mxu0
      %v1598 = vadd.f32 %v1485, %v1597
      %v1599 = vpop.f32.mrf.mxu0
      %v1600 = vpop.f32.mrf.mxu0
      %v1601 = vadd.f32 %v1488, %v1600
      %v1602 = vpop.f32.mrf.mxu0
      %1603 = vmatprep.mubr.bf16.mxu0 %v1135
      %1604 = vmatmul.mubr.bf16.gmra.mxu0 %v1134
      %v1605 = vpop.f32.mrf.mxu0
      %v1606 = vadd.f32 %v1493, %v1605
      %v1607 = vpop.f32.mrf.mxu0
      %v1608 = vpop.f32.mrf.mxu0
      %v1609 = vadd.f32 %v1496, %v1608
      %v1610 = vpop.f32.mrf.mxu0
      %1611 = vmatprep.mubr.bf16.mxu0 %v1139
      %1612 = vmatmul.mubr.bf16.gmra.mxu0 %v1138
      %v1613 = vpop.f32.mrf.mxu0
      %v1614 = vadd.f32 %v1501, %v1613
      %v1615 = vpop.f32.mrf.mxu0
      %v1616 = vpop.f32.mrf.mxu0
      %v1617 = vadd.f32 %v1504, %v1616
      %v1618 = vpop.f32.mrf.mxu0
      %1619 = vmatprep.mubr.bf16.mxu0 %v1143
      %1620 = vmatmul.mubr.bf16.gmra.mxu0 %v1142
      %v1621 = vpop.f32.mrf.mxu0
      %v1622 = vadd.f32 %v1509, %v1621
      %v1623 = vpop.f32.mrf.mxu0
      %v1624 = vpop.f32.mrf.mxu0
      %v1625 = vadd.f32 %v1512, %v1624
      %v1626 = vpop.f32.mrf.mxu0
      %1627 = vmatprep.mubr.bf16.mxu0 %v1147
      %1628 = vmatmul.mubr.bf16.gmra.mxu0 %v1146
      %v1629 = vpop.f32.mrf.mxu0
      %v1630 = vadd.f32 %v1517, %v1629
      %v1631 = vpop.f32.mrf.mxu0
      %v1632 = vpop.f32.mrf.mxu0
      %v1633 = vadd.f32 %v1520, %v1632
      %v1634 = vpop.f32.mrf.mxu0
      %1635 = vdwg.mxu0
      %v1636 = vmax.f32 %v1558, 0.0
      %v1637 = vmax.f32 %v1561, 0.0
      %v1638 = vmax.f32 %v1566, 0.0
      %v1639 = vmax.f32 %v1569, 0.0
      %v1640 = vmax.f32 %v1574, 0.0
      %v1641 = vmax.f32 %v1577, 0.0
      %v1642 = vmax.f32 %v1582, 0.0
      %v1643 = vmax.f32 %v1585, 0.0
      %v1644 = vmax.f32 %v1590, 0.0
      %v1645 = vmax.f32 %v1593, 0.0
      %v1646 = vmax.f32 %v1598, 0.0
      %v1647 = vmax.f32 %v1601, 0.0
      %v1648 = vmax.f32 %v1606, 0.0
      %v1649 = vmax.f32 %v1609, 0.0
      %v1650 = vmax.f32 %v1614, 0.0
      %v1651 = vmax.f32 %v1617, 0.0
      %v1652 = vmax.f32 %v1622, 0.0
      %v1653 = vmax.f32 %v1625, 0.0
      %v1654 = vmax.f32 %v1630, 0.0
      %v1655 = vmax.f32 %v1633, 0.0
      %v1657 = vlaneseq
      %v1658 = vshrl.u32 %v1657, 7
      %v1659 = vsub.s32 0, %v1658
      %v1660 = vrot.slane %v255, %v1659
      %v1662 = vmul.f32 %v1636, %v1660
      %v1663 = vmul.f32 %v1637, %v1660
      %v1664 = vmul.f32 %v1638, %v1660
      %v1665 = vmul.f32 %v1639, %v1660
      %v1666 = vmul.f32 %v1640, %v1660
      %v1667 = vmul.f32 %v1641, %v1660
      %v1668 = vmul.f32 %v1642, %v1660
      %v1669 = vmul.f32 %v1643, %v1660
      %v1670 = vmul.f32 %v1644, %v1660
      %v1671 = vmul.f32 %v1645, %v1660
      %v1672 = vmul.f32 %v1646, %v1660
      %v1673 = vmul.f32 %v1647, %v1660
      %v1674 = vmul.f32 %v1648, %v1660
      %v1675 = vmul.f32 %v1649, %v1660
      %v1676 = vmul.f32 %v1650, %v1660
      %v1677 = vmul.f32 %v1651, %v1660
      %v1678 = vmul.f32 %v1652, %v1660
      %v1679 = vmul.f32 %v1653, %v1660
      %v1680 = vmul.f32 %v1654, %v1660
      %v1681 = vmul.f32 %v1655, %v1660
      %1682 = vadd.xlane.f32.xlu0 %v1662
      %v1683 = vpop.xlane.xlu0 %1682
      %1684 = vadd.xlane.f32.xlu0 %v1663
      %v1685 = vpop.xlane.xlu0 %1684
      %1686 = vadd.xlane.f32.xlu0 %v1664
      %v1687 = vpop.xlane.xlu0 %1686
      %1688 = vadd.xlane.f32.xlu0 %v1665
      %v1689 = vpop.xlane.xlu0 %1688
      %1690 = vadd.xlane.f32.xlu0 %v1666
      %v1691 = vpop.xlane.xlu0 %1690
      %1692 = vadd.xlane.f32.xlu0 %v1667
      %v1693 = vpop.xlane.xlu0 %1692
      %1694 = vadd.xlane.f32.xlu0 %v1668
      %v1695 = vpop.xlane.xlu0 %1694
      %1696 = vadd.xlane.f32.xlu0 %v1669
      %v1697 = vpop.xlane.xlu0 %1696
      %1698 = vadd.xlane.f32.xlu0 %v1670
      %v1699 = vpop.xlane.xlu0 %1698
      %1700 = vadd.xlane.f32.xlu0 %v1671
      %v1701 = vpop.xlane.xlu0 %1700
      %1702 = vadd.xlane.f32.xlu0 %v1672
      %v1703 = vpop.xlane.xlu0 %1702
      %1704 = vadd.xlane.f32.xlu0 %v1673
      %v1705 = vpop.xlane.xlu0 %1704
      %1706 = vadd.xlane.f32.xlu0 %v1674
      %v1707 = vpop.xlane.xlu0 %1706
      %1708 = vadd.xlane.f32.xlu0 %v1675
      %v1709 = vpop.xlane.xlu0 %1708
      %1710 = vadd.xlane.f32.xlu0 %v1676
      %v1711 = vpop.xlane.xlu0 %1710
      %1712 = vadd.xlane.f32.xlu0 %v1677
      %v1713 = vpop.xlane.xlu0 %1712
      %1714 = vadd.xlane.f32.xlu0 %v1678
      %v1715 = vpop.xlane.xlu0 %1714
      %1716 = vadd.xlane.f32.xlu0 %v1679
      %v1717 = vpop.xlane.xlu0 %1716
      %1718 = vadd.xlane.f32.xlu0 %v1680
      %v1719 = vpop.xlane.xlu0 %1718
      %1720 = vadd.xlane.f32.xlu0 %v1681
      %v1721 = vpop.xlane.xlu0 %1720
      %v1722 = vstv %s256
      %v1723 = vadd.f32 %v1683, %v1722
      %v1724 = vadd.f32 %v1685, %v1722
      %v1725 = vadd.f32 %v1687, %v1722
      %v1726 = vadd.f32 %v1689, %v1722
      %v1727 = vadd.f32 %v1691, %v1722
      %v1728 = vadd.f32 %v1693, %v1722
      %v1729 = vadd.f32 %v1695, %v1722
      %v1730 = vadd.f32 %v1697, %v1722
      %v1731 = vadd.f32 %v1699, %v1722
      %v1732 = vadd.f32 %v1701, %v1722
      %v1733 = vadd.f32 %v1703, %v1722
      %v1734 = vadd.f32 %v1705, %v1722
      %v1735 = vadd.f32 %v1707, %v1722
      %v1736 = vadd.f32 %v1709, %v1722
      %v1737 = vadd.f32 %v1711, %v1722
      %v1738 = vadd.f32 %v1713, %v1722
      %v1739 = vadd.f32 %v1715, %v1722
      %v1740 = vadd.f32 %v1717, %v1722
      %v1741 = vadd.f32 %v1719, %v1722
      %v1742 = vadd.f32 %v1721, %v1722
      %v1743 = vxor.u32 %v1723, 2147483648
      %v1744 = vxor.u32 %v1724, 2147483648
      %v1745 = vxor.u32 %v1725, 2147483648
      %v1746 = vxor.u32 %v1726, 2147483648
      %v1747 = vxor.u32 %v1727, 2147483648
      %v1748 = vxor.u32 %v1728, 2147483648
      %v1749 = vxor.u32 %v1729, 2147483648
      %v1750 = vxor.u32 %v1730, 2147483648
      %v1751 = vxor.u32 %v1731, 2147483648
      %v1752 = vxor.u32 %v1732, 2147483648
      %v1753 = vxor.u32 %v1733, 2147483648
      %v1754 = vxor.u32 %v1734, 2147483648
      %v1755 = vxor.u32 %v1735, 2147483648
      %v1756 = vxor.u32 %v1736, 2147483648
      %v1757 = vxor.u32 %v1737, 2147483648
      %v1758 = vxor.u32 %v1738, 2147483648
      %v1759 = vxor.u32 %v1739, 2147483648
      %v1760 = vxor.u32 %v1740, 2147483648
      %v1761 = vxor.u32 %v1741, 2147483648
      %v1762 = vxor.u32 %v1742, 2147483648
      %v1763 = vmul.f32 %v1743, 1.442695
      %v1764 = vpow.pop %v1763
      %v1765 = vmul.f32 %v1744, 1.442695
      %v1766 = vpow.pop %v1765
      %v1767 = vmul.f32 %v1745, 1.442695
      %v1768 = vpow.pop %v1767
      %v1769 = vmul.f32 %v1746, 1.442695
      %v1770 = vpow.pop %v1769
      %v1771 = vmul.f32 %v1747, 1.442695
      %v1772 = vpow.pop %v1771
      %v1773 = vmul.f32 %v1748, 1.442695
      %v1774 = vpow.pop %v1773
      %v1775 = vmul.f32 %v1749, 1.442695
      %v1776 = vpow.pop %v1775
      %v1777 = vmul.f32 %v1750, 1.442695
      %v1778 = vpow.pop %v1777
      %v1779 = vmul.f32 %v1751, 1.442695
      %v1780 = vpow.pop %v1779
      %v1781 = vmul.f32 %v1752, 1.442695
      %v1782 = vpow.pop %v1781
      %v1783 = vmul.f32 %v1753, 1.442695
      %v1784 = vpow.pop %v1783
      %v1785 = vmul.f32 %v1754, 1.442695
      %v1786 = vpow.pop %v1785
      %v1787 = vmul.f32 %v1755, 1.442695
      %v1788 = vpow.pop %v1787
      %v1789 = vmul.f32 %v1756, 1.442695
      %v1790 = vpow.pop %v1789
      %v1791 = vmul.f32 %v1757, 1.442695
      %v1792 = vpow.pop %v1791
      %v1793 = vmul.f32 %v1758, 1.442695
      %v1794 = vpow.pop %v1793
      %v1795 = vmul.f32 %v1759, 1.442695
      %v1796 = vpow.pop %v1795
      %v1797 = vmul.f32 %v1760, 1.442695
      %v1798 = vpow.pop %v1797
      %v1799 = vmul.f32 %v1761, 1.442695
      %v1800 = vpow.pop %v1799
      %v1801 = vmul.f32 %v1762, 1.442695
      %v1802 = vpow.pop %v1801
      %v1803 = vadd.f32 %v1764, 1.0
      %v1804 = vadd.f32 %v1766, 1.0
      %v1805 = vadd.f32 %v1768, 1.0
      %v1806 = vadd.f32 %v1770, 1.0
      %v1807 = vadd.f32 %v1772, 1.0
      %v1808 = vadd.f32 %v1774, 1.0
      %v1809 = vadd.f32 %v1776, 1.0
      %v1810 = vadd.f32 %v1778, 1.0
      %v1811 = vadd.f32 %v1780, 1.0
      %v1812 = vadd.f32 %v1782, 1.0
      %v1813 = vadd.f32 %v1784, 1.0
      %v1814 = vadd.f32 %v1786, 1.0
      %v1815 = vadd.f32 %v1788, 1.0
      %v1816 = vadd.f32 %v1790, 1.0
      %v1817 = vadd.f32 %v1792, 1.0
      %v1818 = vadd.f32 %v1794, 1.0
      %v1819 = vadd.f32 %v1796, 1.0
      %v1820 = vadd.f32 %v1798, 1.0
      %v1821 = vadd.f32 %v1800, 1.0
      %v1822 = vadd.f32 %v1802, 1.0
      %v1823 = vrcp.pop %v1803
      %v1824 = vmul.f32 1.0, %v1823
      %v1825 = vrcp.pop %v1804
      %v1826 = vmul.f32 1.0, %v1825
      %v1827 = vrcp.pop %v1805
      %v1828 = vmul.f32 1.0, %v1827
      %v1829 = vrcp.pop %v1806
      %v1830 = vmul.f32 1.0, %v1829
      %v1831 = vrcp.pop %v1807
      %v1832 = vmul.f32 1.0, %v1831
      %v1833 = vrcp.pop %v1808
      %v1834 = vmul.f32 1.0, %v1833
      %v1835 = vrcp.pop %v1809
      %v1836 = vmul.f32 1.0, %v1835
      %v1837 = vrcp.pop %v1810
      %v1838 = vmul.f32 1.0, %v1837
      %v1839 = vrcp.pop %v1811
      %v1840 = vmul.f32 1.0, %v1839
      %v1841 = vrcp.pop %v1812
      %v1842 = vmul.f32 1.0, %v1841
      %v1843 = vrcp.pop %v1813
      %v1844 = vmul.f32 1.0, %v1843
      %v1845 = vrcp.pop %v1814
      %v1846 = vmul.f32 1.0, %v1845
      %v1847 = vrcp.pop %v1815
      %v1848 = vmul.f32 1.0, %v1847
      %v1849 = vrcp.pop %v1816
      %v1850 = vmul.f32 1.0, %v1849
      %v1851 = vrcp.pop %v1817
      %v1852 = vmul.f32 1.0, %v1851
      %v1853 = vrcp.pop %v1818
      %v1854 = vmul.f32 1.0, %v1853
      %v1855 = vrcp.pop %v1819
      %v1856 = vmul.f32 1.0, %v1855
      %v1857 = vrcp.pop %v1820
      %v1858 = vmul.f32 1.0, %v1857
      %v1859 = vrcp.pop %v1821
      %v1860 = vmul.f32 1.0, %v1859
      %v1861 = vrcp.pop %v1822
      %v1862 = vmul.f32 1.0, %v1861
      %v1863 = vunpack.c.l.bf16 %v233
      %v1864 = vunpack.c.h.bf16 %v233
      %v1865 = vunpack.c.l.bf16 %v234
      %v1866 = vunpack.c.h.bf16 %v234
      %v1867 = vunpack.c.l.bf16 %v235
      %v1868 = vunpack.c.h.bf16 %v235
      %v1869 = vunpack.c.l.bf16 %v236
      %v1870 = vunpack.c.h.bf16 %v236
      %v1871 = vunpack.c.l.bf16 %v237
      %v1872 = vunpack.c.h.bf16 %v237
      %v1873 = vunpack.c.l.bf16 %v238
      %v1874 = vunpack.c.h.bf16 %v238
      %v1875 = vunpack.c.l.bf16 %v239
      %v1876 = vunpack.c.h.bf16 %v239
      %v1877 = vunpack.c.l.bf16 %v240
      %v1878 = vunpack.c.h.bf16 %v240
      %v1879 = vunpack.c.l.bf16 %v241
      %v1880 = vunpack.c.h.bf16 %v241
      %v1881 = vunpack.c.l.bf16 %v242
      %v1882 = vunpack.c.h.bf16 %v242
      %v1883 = vunpack.c.l.bf16 %v243
      %v1884 = vunpack.c.h.bf16 %v243
      %v1885 = vunpack.c.l.bf16 %v244
      %v1886 = vunpack.c.h.bf16 %v244
      %v1887 = vunpack.c.l.bf16 %v245
      %v1888 = vunpack.c.h.bf16 %v245
      %v1889 = vunpack.c.l.bf16 %v246
      %v1890 = vunpack.c.h.bf16 %v246
      %v1891 = vunpack.c.l.bf16 %v247
      %v1892 = vunpack.c.h.bf16 %v247
      %v1893 = vunpack.c.l.bf16 %v248
      %v1894 = vunpack.c.h.bf16 %v248
      %v1895 = vunpack.c.l.bf16 %v249
      %v1896 = vunpack.c.h.bf16 %v249
      %v1897 = vunpack.c.l.bf16 %v250
      %v1898 = vunpack.c.h.bf16 %v250
      %v1899 = vunpack.c.l.bf16 %v251
      %v1900 = vunpack.c.h.bf16 %v251
      %v1901 = vunpack.c.l.bf16 %v252
      %v1902 = vunpack.c.h.bf16 %v252
      %v1903 = vmul.f32 %v1863, %v1863
      %v1904 = vmul.f32 %v1864, %v1864
      %v1905 = vmul.f32 %v1865, %v1865
      %v1906 = vmul.f32 %v1866, %v1866
      %v1907 = vmul.f32 %v1867, %v1867
      %v1908 = vmul.f32 %v1868, %v1868
      %v1909 = vmul.f32 %v1869, %v1869
      %v1910 = vmul.f32 %v1870, %v1870
      %v1911 = vmul.f32 %v1871, %v1871
      %v1912 = vmul.f32 %v1872, %v1872
      %v1913 = vmul.f32 %v1873, %v1873
      %v1914 = vmul.f32 %v1874, %v1874
      %v1915 = vmul.f32 %v1875, %v1875
      %v1916 = vmul.f32 %v1876, %v1876
      %v1917 = vmul.f32 %v1877, %v1877
      %v1918 = vmul.f32 %v1878, %v1878
      %v1919 = vmul.f32 %v1879, %v1879
      %v1920 = vmul.f32 %v1880, %v1880
      %v1921 = vmul.f32 %v1881, %v1881
      %v1922 = vmul.f32 %v1882, %v1882
      %v1923 = vmul.f32 %v1883, %v1883
      %v1924 = vmul.f32 %v1884, %v1884
      %v1925 = vmul.f32 %v1885, %v1885
      %v1926 = vmul.f32 %v1886, %v1886
      %v1927 = vmul.f32 %v1887, %v1887
      %v1928 = vmul.f32 %v1888, %v1888
      %v1929 = vmul.f32 %v1889, %v1889
      %v1930 = vmul.f32 %v1890, %v1890
      %v1931 = vmul.f32 %v1891, %v1891
      %v1932 = vmul.f32 %v1892, %v1892
      %v1933 = vmul.f32 %v1893, %v1893
      %v1934 = vmul.f32 %v1894, %v1894
      %v1935 = vmul.f32 %v1895, %v1895
      %v1936 = vmul.f32 %v1896, %v1896
      %v1937 = vmul.f32 %v1897, %v1897
      %v1938 = vmul.f32 %v1898, %v1898
      %v1939 = vmul.f32 %v1899, %v1899
      %v1940 = vmul.f32 %v1900, %v1900
      %v1941 = vmul.f32 %v1901, %v1901
      %v1942 = vmul.f32 %v1902, %v1902
      %v1943 = vadd.f32 %v1903, %v1904
      %1944 = vadd.xlane.f32.xlu0 %v1943
      %v1945 = vpop.xlane.xlu0 %1944
      %v1946 = vadd.f32 %v1905, %v1906
      %1947 = vadd.xlane.f32.xlu0 %v1946
      %v1948 = vpop.xlane.xlu0 %1947
      %v1949 = vadd.f32 %v1907, %v1908
      %1950 = vadd.xlane.f32.xlu0 %v1949
      %v1951 = vpop.xlane.xlu0 %1950
      %v1952 = vadd.f32 %v1909, %v1910
      %1953 = vadd.xlane.f32.xlu0 %v1952
      %v1954 = vpop.xlane.xlu0 %1953
      %v1955 = vadd.f32 %v1911, %v1912
      %1956 = vadd.xlane.f32.xlu0 %v1955
      %v1957 = vpop.xlane.xlu0 %1956
      %v1958 = vadd.f32 %v1913, %v1914
      %1959 = vadd.xlane.f32.xlu0 %v1958
      %v1960 = vpop.xlane.xlu0 %1959
      %v1961 = vadd.f32 %v1915, %v1916
      %1962 = vadd.xlane.f32.xlu0 %v1961
      %v1963 = vpop.xlane.xlu0 %1962
      %v1964 = vadd.f32 %v1917, %v1918
      %1965 = vadd.xlane.f32.xlu0 %v1964
      %v1966 = vpop.xlane.xlu0 %1965
      %v1967 = vadd.f32 %v1919, %v1920
      %1968 = vadd.xlane.f32.xlu0 %v1967
      %v1969 = vpop.xlane.xlu0 %1968
      %v1970 = vadd.f32 %v1921, %v1922
      %1971 = vadd.xlane.f32.xlu0 %v1970
      %v1972 = vpop.xlane.xlu0 %1971
      %v1973 = vadd.f32 %v1923, %v1924
      %1974 = vadd.xlane.f32.xlu0 %v1973
      %v1975 = vpop.xlane.xlu0 %1974
      %v1976 = vadd.f32 %v1925, %v1926
      %1977 = vadd.xlane.f32.xlu0 %v1976
      %v1978 = vpop.xlane.xlu0 %1977
      %v1979 = vadd.f32 %v1927, %v1928
      %1980 = vadd.xlane.f32.xlu0 %v1979
      %v1981 = vpop.xlane.xlu0 %1980
      %v1982 = vadd.f32 %v1929, %v1930
      %1983 = vadd.xlane.f32.xlu0 %v1982
      %v1984 = vpop.xlane.xlu0 %1983
      %v1985 = vadd.f32 %v1931, %v1932
      %1986 = vadd.xlane.f32.xlu0 %v1985
      %v1987 = vpop.xlane.xlu0 %1986
      %v1988 = vadd.f32 %v1933, %v1934
      %1989 = vadd.xlane.f32.xlu0 %v1988
      %v1990 = vpop.xlane.xlu0 %1989
      %v1991 = vadd.f32 %v1935, %v1936
      %1992 = vadd.xlane.f32.xlu0 %v1991
      %v1993 = vpop.xlane.xlu0 %1992
      %v1994 = vadd.f32 %v1937, %v1938
      %1995 = vadd.xlane.f32.xlu0 %v1994
      %v1996 = vpop.xlane.xlu0 %1995
      %v1997 = vadd.f32 %v1939, %v1940
      %1998 = vadd.xlane.f32.xlu0 %v1997
      %v1999 = vpop.xlane.xlu0 %1998
      %v2000 = vadd.f32 %v1941, %v1942
      %2001 = vadd.xlane.f32.xlu0 %v2000
      %v2002 = vpop.xlane.xlu0 %2001
      %v2003 = vrsqrt.pop %v1945
      %v2004 = vmul.f32 %v1945, %v2003
      %vm2005 = vcmp.eq.f32.partialorder %v1945, inf
      %v2006 = vsel %vm2005, %v1945, %v2004
      %vm2007 = vcmp.eq.f32.partialorder %v1945, 0.0
      %v2008 = vand.u32 %v1945, 2147483648
      %v2009 = vsel %vm2007, %v2008, %v2006
      %v2010 = vrsqrt.pop %v1948
      %v2011 = vmul.f32 %v1948, %v2010
      %vm2012 = vcmp.eq.f32.partialorder %v1948, inf
      %v2013 = vsel %vm2012, %v1948, %v2011
      %vm2014 = vcmp.eq.f32.partialorder %v1948, 0.0
      %v2015 = vand.u32 %v1948, 2147483648
      %v2016 = vsel %vm2014, %v2015, %v2013
      %v2017 = vrsqrt.pop %v1951
      %v2018 = vmul.f32 %v1951, %v2017
      %vm2019 = vcmp.eq.f32.partialorder %v1951, inf
      %v2020 = vsel %vm2019, %v1951, %v2018
      %vm2021 = vcmp.eq.f32.partialorder %v1951, 0.0
      %v2022 = vand.u32 %v1951, 2147483648
      %v2023 = vsel %vm2021, %v2022, %v2020
      %v2024 = vrsqrt.pop %v1954
      %v2025 = vmul.f32 %v1954, %v2024
      %vm2026 = vcmp.eq.f32.partialorder %v1954, inf
      %v2027 = vsel %vm2026, %v1954, %v2025
      %vm2028 = vcmp.eq.f32.partialorder %v1954, 0.0
      %v2029 = vand.u32 %v1954, 2147483648
      %v2030 = vsel %vm2028, %v2029, %v2027
      %v2031 = vrsqrt.pop %v1957
      %v2032 = vmul.f32 %v1957, %v2031
      %vm2033 = vcmp.eq.f32.partialorder %v1957, inf
      %v2034 = vsel %vm2033, %v1957, %v2032
      %vm2035 = vcmp.eq.f32.partialorder %v1957, 0.0
      %v2036 = vand.u32 %v1957, 2147483648
      %v2037 = vsel %vm2035, %v2036, %v2034
      %v2038 = vrsqrt.pop %v1960
      %v2039 = vmul.f32 %v1960, %v2038
      %vm2040 = vcmp.eq.f32.partialorder %v1960, inf
      %v2041 = vsel %vm2040, %v1960, %v2039
      %vm2042 = vcmp.eq.f32.partialorder %v1960, 0.0
      %v2043 = vand.u32 %v1960, 2147483648
      %v2044 = vsel %vm2042, %v2043, %v2041
      %v2045 = vrsqrt.pop %v1963
      %v2046 = vmul.f32 %v1963, %v2045
      %vm2047 = vcmp.eq.f32.partialorder %v1963, inf
      %v2048 = vsel %vm2047, %v1963, %v2046
      %vm2049 = vcmp.eq.f32.partialorder %v1963, 0.0
      %v2050 = vand.u32 %v1963, 2147483648
      %v2051 = vsel %vm2049, %v2050, %v2048
      %v2052 = vrsqrt.pop %v1966
      %v2053 = vmul.f32 %v1966, %v2052
      %vm2054 = vcmp.eq.f32.partialorder %v1966, inf
      %v2055 = vsel %vm2054, %v1966, %v2053
      %vm2056 = vcmp.eq.f32.partialorder %v1966, 0.0
      %v2057 = vand.u32 %v1966, 2147483648
      %v2058 = vsel %vm2056, %v2057, %v2055
      %v2059 = vrsqrt.pop %v1969
      %v2060 = vmul.f32 %v1969, %v2059
      %vm2061 = vcmp.eq.f32.partialorder %v1969, inf
      %v2062 = vsel %vm2061, %v1969, %v2060
      %vm2063 = vcmp.eq.f32.partialorder %v1969, 0.0
      %v2064 = vand.u32 %v1969, 2147483648
      %v2065 = vsel %vm2063, %v2064, %v2062
      %v2066 = vrsqrt.pop %v1972
      %v2067 = vmul.f32 %v1972, %v2066
      %vm2068 = vcmp.eq.f32.partialorder %v1972, inf
      %v2069 = vsel %vm2068, %v1972, %v2067
      %vm2070 = vcmp.eq.f32.partialorder %v1972, 0.0
      %v2071 = vand.u32 %v1972, 2147483648
      %v2072 = vsel %vm2070, %v2071, %v2069
      %v2073 = vrsqrt.pop %v1975
      %v2074 = vmul.f32 %v1975, %v2073
      %vm2075 = vcmp.eq.f32.partialorder %v1975, inf
      %v2076 = vsel %vm2075, %v1975, %v2074
      %vm2077 = vcmp.eq.f32.partialorder %v1975, 0.0
      %v2078 = vand.u32 %v1975, 2147483648
      %v2079 = vsel %vm2077, %v2078, %v2076
      %v2080 = vrsqrt.pop %v1978
      %v2081 = vmul.f32 %v1978, %v2080
      %vm2082 = vcmp.eq.f32.partialorder %v1978, inf
      %v2083 = vsel %vm2082, %v1978, %v2081
      %vm2084 = vcmp.eq.f32.partialorder %v1978, 0.0
      %v2085 = vand.u32 %v1978, 2147483648
      %v2086 = vsel %vm2084, %v2085, %v2083
      %v2087 = vrsqrt.pop %v1981
      %v2088 = vmul.f32 %v1981, %v2087
      %vm2089 = vcmp.eq.f32.partialorder %v1981, inf
      %v2090 = vsel %vm2089, %v1981, %v2088
      %vm2091 = vcmp.eq.f32.partialorder %v1981, 0.0
      %v2092 = vand.u32 %v1981, 2147483648
      %v2093 = vsel %vm2091, %v2092, %v2090
      %v2094 = vrsqrt.pop %v1984
      %v2095 = vmul.f32 %v1984, %v2094
      %vm2096 = vcmp.eq.f32.partialorder %v1984, inf
      %v2097 = vsel %vm2096, %v1984, %v2095
      %vm2098 = vcmp.eq.f32.partialorder %v1984, 0.0
      %v2099 = vand.u32 %v1984, 2147483648
      %v2100 = vsel %vm2098, %v2099, %v2097
      %v2101 = vrsqrt.pop %v1987
      %v2102 = vmul.f32 %v1987, %v2101
      %vm2103 = vcmp.eq.f32.partialorder %v1987, inf
      %v2104 = vsel %vm2103, %v1987, %v2102
      %vm2105 = vcmp.eq.f32.partialorder %v1987, 0.0
      %v2106 = vand.u32 %v1987, 2147483648
      %v2107 = vsel %vm2105, %v2106, %v2104
      %v2108 = vrsqrt.pop %v1990
      %v2109 = vmul.f32 %v1990, %v2108
      %vm2110 = vcmp.eq.f32.partialorder %v1990, inf
      %v2111 = vsel %vm2110, %v1990, %v2109
      %vm2112 = vcmp.eq.f32.partialorder %v1990, 0.0
      %v2113 = vand.u32 %v1990, 2147483648
      %v2114 = vsel %vm2112, %v2113, %v2111
      %v2115 = vrsqrt.pop %v1993
      %v2116 = vmul.f32 %v1993, %v2115
      %vm2117 = vcmp.eq.f32.partialorder %v1993, inf
      %v2118 = vsel %vm2117, %v1993, %v2116
      %vm2119 = vcmp.eq.f32.partialorder %v1993, 0.0
      %v2120 = vand.u32 %v1993, 2147483648
      %v2121 = vsel %vm2119, %v2120, %v2118
      %v2122 = vrsqrt.pop %v1996
      %v2123 = vmul.f32 %v1996, %v2122
      %vm2124 = vcmp.eq.f32.partialorder %v1996, inf
      %v2125 = vsel %vm2124, %v1996, %v2123
      %vm2126 = vcmp.eq.f32.partialorder %v1996, 0.0
      %v2127 = vand.u32 %v1996, 2147483648
      %v2128 = vsel %vm2126, %v2127, %v2125
      %v2129 = vrsqrt.pop %v1999
      %v2130 = vmul.f32 %v1999, %v2129
      %vm2131 = vcmp.eq.f32.partialorder %v1999, inf
      %v2132 = vsel %vm2131, %v1999, %v2130
      %vm2133 = vcmp.eq.f32.partialorder %v1999, 0.0
      %v2134 = vand.u32 %v1999, 2147483648
      %v2135 = vsel %vm2133, %v2134, %v2132
      %v2136 = vrsqrt.pop %v2002
      %v2137 = vmul.f32 %v2002, %v2136
      %vm2138 = vcmp.eq.f32.partialorder %v2002, inf
      %v2139 = vsel %vm2138, %v2002, %v2137
      %vm2140 = vcmp.eq.f32.partialorder %v2002, 0.0
      %v2141 = vand.u32 %v2002, 2147483648
      %v2142 = vsel %vm2140, %v2141, %v2139
      %v2143 = vlaneseq
      %v2144 = vand.u32 %v2143, 127
      %vm2145 = vcmp.eq.s32.totalorder %v2144, 0
      %vm2146 = vcmp.eq.s32.totalorder %v2144, 1
      %v2147 = vsel %vm2146, %v2009, 0.0
      %v2148 = vsel %vm2146, %v2016, 0.0
      %v2149 = vsel %vm2146, %v2023, 0.0
      %v2150 = vsel %vm2146, %v2030, 0.0
      %v2151 = vsel %vm2146, %v2037, 0.0
      %v2152 = vsel %vm2146, %v2044, 0.0
      %v2153 = vsel %vm2146, %v2051, 0.0
      %v2154 = vsel %vm2146, %v2058, 0.0
      %v2155 = vsel %vm2146, %v2065, 0.0
      %v2156 = vsel %vm2146, %v2072, 0.0
      %v2157 = vsel %vm2146, %v2079, 0.0
      %v2158 = vsel %vm2146, %v2086, 0.0
      %v2159 = vsel %vm2146, %v2093, 0.0
      %v2160 = vsel %vm2146, %v2100, 0.0
      %v2161 = vsel %vm2146, %v2107, 0.0
      %v2162 = vsel %vm2146, %v2114, 0.0
      %v2163 = vsel %vm2146, %v2121, 0.0
      %v2164 = vsel %vm2146, %v2128, 0.0
      %v2165 = vsel %vm2146, %v2135, 0.0
      %v2166 = vsel %vm2146, %v2142, 0.0
      %v2167 = vsel %vm2145, %v1824, %v2147
      %v2168 = vsel %vm2145, %v1826, %v2148
      %v2169 = vsel %vm2145, %v1828, %v2149
      %v2170 = vsel %vm2145, %v1830, %v2150
      %v2171 = vsel %vm2145, %v1832, %v2151
      %v2172 = vsel %vm2145, %v1834, %v2152
      %v2173 = vsel %vm2145, %v1836, %v2153
      %v2174 = vsel %vm2145, %v1838, %v2154
      %v2175 = vsel %vm2145, %v1840, %v2155
      %v2176 = vsel %vm2145, %v1842, %v2156
      %v2177 = vsel %vm2145, %v1844, %v2157
      %v2178 = vsel %vm2145, %v1846, %v2158
      %v2179 = vsel %vm2145, %v1848, %v2159
      %v2180 = vsel %vm2145, %v1850, %v2160
      %v2181 = vsel %vm2145, %v1852, %v2161
      %v2182 = vsel %vm2145, %v1854, %v2162
      %v2183 = vsel %vm2145, %v1856, %v2163
      %v2184 = vsel %vm2145, %v1858, %v2164
      %v2185 = vsel %vm2145, %v1860, %v2165
      %v2186 = vsel %vm2145, %v1862, %v2166
      %v2187 = vpack.c.bf16 %v2168, %v2167
      %v2188 = vpack.c.bf16 %v2170, %v2169
      %v2189 = vpack.c.bf16 %v2172, %v2171
      %v2190 = vpack.c.bf16 %v2174, %v2173
      %v2191 = vpack.c.bf16 %v2176, %v2175
      %v2192 = vpack.c.bf16 %v2178, %v2177
      %v2193 = vpack.c.bf16 %v2180, %v2179
      %v2194 = vpack.c.bf16 %v2182, %v2181
      %v2195 = vpack.c.bf16 %v2184, %v2183
      %v2196 = vpack.c.bf16 %v2186, %v2185
      %v2207 = vunpack.c.l.b16 %v2187
      %v2208 = vunpack.c.h.b16 %v2187
      %v2209 = vunpack.c.l.b16 %v2188
      %v2210 = vunpack.c.h.b16 %v2188
      %v2211 = vunpack.c.l.b16 %v2189
      %v2212 = vunpack.c.h.b16 %v2189
      %v2213 = vunpack.c.l.b16 %v2190
      %v2214 = vunpack.c.h.b16 %v2190
      %v2215 = vunpack.c.l.b16 %v2191
      %v2216 = vunpack.c.h.b16 %v2191
      %v2217 = vunpack.c.l.b16 %v2192
      %v2218 = vunpack.c.h.b16 %v2192
      %v2219 = vunpack.c.l.b16 %v2193
      %v2220 = vunpack.c.h.b16 %v2193
      %v2221 = vunpack.c.l.b16 %v2194
      %v2222 = vunpack.c.h.b16 %v2194
      %v2223 = vunpack.c.l.b16 %v2195
      %v2224 = vunpack.c.h.b16 %v2195
      %v2225 = vunpack.c.l.b16 %v2196
      %v2226 = vunpack.c.h.b16 %v2196
      %v2227 = vpack.c.b16 %v2207, %v2207
      %v2228 = vpack.c.b16 %v2208, %v2208
      %v2229 = vpack.c.b16 %v2209, %v2209
      %v2230 = vpack.c.b16 %v2210, %v2210
      %v2231 = vpack.c.b16 %v2211, %v2211
      %v2232 = vpack.c.b16 %v2212, %v2212
      %v2233 = vpack.c.b16 %v2213, %v2213
      %v2234 = vpack.c.b16 %v2214, %v2214
      %v2235 = vpack.c.b16 %v2215, %v2215
      %v2236 = vpack.c.b16 %v2216, %v2216
      %v2237 = vpack.c.b16 %v2217, %v2217
      %v2238 = vpack.c.b16 %v2218, %v2218
      %v2239 = vpack.c.b16 %v2219, %v2219
      %v2240 = vpack.c.b16 %v2220, %v2220
      %v2241 = vpack.c.b16 %v2221, %v2221
      %v2242 = vpack.c.b16 %v2222, %v2222
      %v2243 = vpack.c.b16 %v2223, %v2223
      %v2244 = vpack.c.b16 %v2224, %v2224
      %v2245 = vpack.c.b16 %v2225, %v2225
      %v2246 = vpack.c.b16 %v2226, %v2226
      %2267 = vst [vmem:[%s230] sm:$0xf] %v2227
      %2268 = vst [vmem:[%s230 + $0x4] sm:$0xf] %v2228
      %2269 = vst [vmem:[%s230 + $0x8] sm:$0xf] %v2229
      %2270 = vst [vmem:[%s230 + $0xc] sm:$0xf] %v2230
      %2271 = vst [vmem:[%s230 + $0x10] sm:$0xf] %v2231
      %2272 = vst [vmem:[%s230 + $0x14] sm:$0xf] %v2232
      %2273 = vst [vmem:[%s230 + $0x18] sm:$0xf] %v2233
      %2274 = vst [vmem:[%s230 + $0x1c] sm:$0xf] %v2234
      %2275 = vst [vmem:[%s230 + $0x20] sm:$0xf] %v2235
      %2276 = vst [vmem:[%s230 + $0x24] sm:$0xf] %v2236
      %2277 = vst [vmem:[%s230 + $0x28] sm:$0xf] %v2237
      %2278 = vst [vmem:[%s230 + $0x2c] sm:$0xf] %v2238
      %2279 = vst [vmem:[%s230 + $0x30] sm:$0xf] %v2239
      %2280 = vst [vmem:[%s230 + $0x34] sm:$0xf] %v2240
      %2281 = vst [vmem:[%s230 + $0x38] sm:$0xf] %v2241
      %2282 = vst [vmem:[%s230 + $0x3c] sm:$0xf] %v2242
      %2283 = vst [vmem:[%s230 + $0x40] sm:$0xf] %v2243
      %2284 = vst [vmem:[%s230 + $0x44] sm:$0xf] %v2244
      %2285 = vst [vmem:[%s230 + $0x48] sm:$0xf] %v2245
      %2286 = vst [vmem:[%s230 + $0x4c] sm:$0xf] %v2246
      %s2287 = smul.u32 20, %s17
      %p2288 = scmp.lt.s32.totalorder %s2287, 39
      %s2289 = scalar_select %p2288, %s2287, 39
      %s2290 = smul.addr %s2289, 4
      %s2291 = scalar_lea.vmem %s5, %s2290
      // Predicated region
      $region41: #{model_forward.1} parent=39 // pred_check
        %p2292 = pneg %p145
      $region42: #{model_forward.1} parent=39 // pred_check_branch
        %2294 = sbr.rel (%p2292) target = $region44
      $region43: #{model_forward.1} parent=39 // pred_region
        %s2295 = smul.u32 20, %s17
      $region44: #{model_forward.1} parent=39 // pred_fallthru
        _
    $region40: #{model_forward.1} parent=5 // pred_fallthru
      _
    %p2296 = scmp.le.s32.totalorder 2, %s12
    // Predicated region
    $region45: #{model_forward.1} parent=5 // pred_check
      %p2297 = pneg %p2296
    $region46: #{model_forward.1} parent=5 // pred_check_branch
      %2299 = sbr.rel (%p2297) target = $region48
    $region47: #{model_forward.1} parent=5 // pred_region
      %s2300 = ssub.s32 %s12, 2
      // Predicated region
      $region49: #{model_forward.1} parent=47 // pred_check
        %p2301 = pneg %p151
      $region50: #{model_forward.1} parent=47 // pred_check_branch
        %2303 = sbr.rel (%p2301) target = $region52
      $region51: #{model_forward.1} parent=47 // pred_region
        %s2304 = smul.u32 20, %s18
        %p2305 = scmp.lt.s32.totalorder %s2304, 39
        %s2306 = scalar_select %p2305, %s2304, 39
        %s2307 = smul.addr %s2306, 4
        %s2308 = scalar_lea.vmem %s5, %s2307
      $region52: #{model_forward.1} parent=47 // pred_fallthru
        _
    $region48: #{model_forward.1} parent=5 // pred_fallthru
      _
  $region6: #{model_forward.1} parent=0 // loop_footer
    %s16 = sadd.s32 1, %s12
  $region7: #{model_forward.1} parent=0 // loop_footer_branch
    %11 = sbr.rel target = $region3
  $region8: #{model_forward.1} parent=0 // loop_exit
    _

</llo_original>
